<compile_context>
chip_gen: v5e
topology: v5e:2x2
jax: 0.10.0
libtpu: 0.0.40
codegen_flags: <defaults>
</compile_context>

<pallas_src>
import jax
import jax.numpy as jnp
from jax.experimental import pallas as pl
from jax.experimental.pallas import tpu as pltpu

RATES = (2, 4, 8, 12)
EPS = 1e-5


def aspp_forward(x, w3, w1, g1, b1, m1, v1, g2, b2, m2, v2, rates=RATES):
    """x: [B, C, H, W] f32 (NCHW, like PyTorch).
    w3: [NB, depth, C, 3, 3]        per-branch 3x3 conv, OIHW
    w1: [NB, depth//4, depth, 1, 1] per-branch 1x1 conv, OIHW
    g1/b1/m1/v1: [NB, depth]        BN1 gamma/beta/running_mean/running_var
    g2/b2/m2/v2: [NB, depth//4]     BN2 gamma/beta/running_mean/running_var
    rates: static Python ints (module constructor constants).
    Returns [B, NB*(depth//4), H, W] (channel concat of the branches).
    """
    B, C, H, W = x.shape
    NB, D = w3.shape[0], w3.shape[1]
    D4 = w1.shape[1]
    HW = H * W
    rmax = max(rates)
    halo = rmax * W + rmax                     # max |dh*W + dw| over all taps
    Lf = HW + 2 * halo
    Cp = ((C + 7) // 8) * 8                    # sublane-aligned channel count

    # ---- wrapper-side preprocessing (cheap, done once) -----------------------
    # Flat, zero-padded NCHW input [B, Cp, Lf].  No NHWC transpose.
    x_flat = jnp.pad(x.reshape(B, C, HW),
                     ((0, 0), (0, Cp - C), (halo, halo)))

    # Inference-mode BN folded: scale into the conv weights, shift kept.
    s1 = g1 * jax.lax.rsqrt(v1 + EPS)                          # [NB, D]
    t1 = (b1 - m1 * s1)[..., None]                             # [NB, D, 1]
    s2 = g2 * jax.lax.rsqrt(v2 + EPS)                          # [NB, D4]
    t2 = (b2 - m2 * s2)[..., None]                             # [NB, D4, 1]

    # 3x3 weights -> contraction-ready [NB, D, 9*Cp]; row index is
    # (kh*3 + kw)*Cp + c, matching the in-kernel tap concatenation order.
    w3p = jnp.pad(w3 * s1[:, :, None, None, None],
                  ((0, 0), (0, 0), (0, Cp - C), (0, 0), (0, 0)))
    w3k = jnp.transpose(w3p, (0, 1, 3, 4, 2)).reshape(NB, D, 9 * Cp)
    # 1x1 weights -> [NB, D4, D] with BN2 scale folded.
    w1k = w1[:, :, :, 0, 0] * s2[:, :, None]

    # Per-branch column masks killing horizontal wrap-around of the flat taps:
    #   masks[br, 0, p] = 1 if (p mod W) >= rate       (tap dw = -rate valid)
    #   masks[br, 1, p] = 1 if (p mod W) <  W - rate   (tap dw = +rate valid)
    col = jnp.tile(jnp.arange(W, dtype=jnp.int32), H)
    masks = jnp.stack(
        [jnp.stack([(col >= r).astype(x.dtype),
                    (col < W - r).astype(x.dtype)]) for r in rates])  # [NB,2,HW]

    # ---- kernel: one grid step per batch element, branches unrolled ----------
    def kernel(x_ref, w3_ref, w1_ref, t1_ref, t2_ref, m_ref, o_ref):
        # x_ref: [Cp, Lf]   w3_ref: [NB, D, 9*Cp]   w1_ref: [NB, D4, D]
        # t1_ref:[NB, D, 1] t2_ref: [NB, D4, 1]     m_ref:  [NB, 2, HW]
        # o_ref: [NB, D4, HW]   (lane-dense output block)
        for br, rate in enumerate(rates):              # static unroll (NB small)
            mb = m_ref[br]                             # [2, HW]
            ml, mr = mb[0:1, :], mb[1:2, :]            # [1, HW] each
            taps = []
            for kh in range(3):
                for kw in range(3):
                    off = halo + ((kh - 1) * W + (kw - 1)) * rate   # static int
                    sl = x_ref[:, pl.ds(off, HW)]                   # [Cp, HW]
                    if kw == 0:
                        sl = sl * ml
                    elif kw == 2:
                        sl = sl * mr
                    taps.append(sl)
            xt = jnp.concatenate(taps, axis=0)                      # [9*Cp, HW]
            # Dilated 3x3 conv (BN1 scale folded into weights): one K=9*Cp matmul.
            y1 = jnp.dot(w3_ref[br], xt, preferred_element_type=jnp.float32)
            y1 = jnp.maximum(y1 + t1_ref[br], 0.0)                  # BN1 shift + ReLU
            # 1x1 conv (BN2 scale folded), BN2 shift + ReLU, lane-dense store.
            y2 = jnp.dot(w1_ref[br], y1, preferred_element_type=jnp.float32)
            y2 = jnp.maximum(y2 + t2_ref[br], 0.0)
            o_ref[br] = y2.astype(o_ref.dtype)

    out = pl.pallas_call(
        kernel,
        out_shape=jax.ShapeDtypeStruct((B, NB, D4, HW), x.dtype),
        grid_spec=pltpu.PrefetchScalarGridSpec(
            num_scalar_prefetch=0,
            grid=(B,),
            in_specs=[
                pl.BlockSpec((None, Cp, Lf),  lambda b: (b, 0, 0)),
                pl.BlockSpec((NB, D, 9 * Cp), lambda b: (0, 0, 0)),
                pl.BlockSpec((NB, D4, D),     lambda b: (0, 0, 0)),
                pl.BlockSpec((NB, D, 1),      lambda b: (0, 0, 0)),
                pl.BlockSpec((NB, D4, 1),     lambda b: (0, 0, 0)),
                pl.BlockSpec((NB, 2, HW),     lambda b: (0, 0, 0)),
            ],
            out_specs=pl.BlockSpec((None, NB, D4, HW), lambda b: (b, 0, 0, 0)),
        ),
        compiler_params=pltpu.CompilerParams(
            dimension_semantics=("parallel",),
            vmem_limit_bytes=32 * 1024 * 1024,
        ),
    )(x_flat, w3k, w1k, t1, t2, masks)

    # [B, NB, D4, HW] -> PyTorch channel concat [B, NB*D4, H, W] (free reshape).
    return out.reshape(B, NB * D4, H, W)


def _reference(x, w3, w1, g1, b1, m1, v1, g2, b2, m2, v2, rates=RATES):
    """Pure-JAX reference of the PyTorch forward (eval-mode BN)."""
    outs = []
    for i, rate in enumerate(rates):
        y = jax.lax.conv_general_dilated(
            x, w3[i], window_strides=(1, 1),
            padding=((rate, rate), (rate, rate)),
            rhs_dilation=(rate, rate),
            dimension_numbers=("NCHW", "OIHW", "NCHW"),
            precision=jax.lax.Precision.HIGHEST)
        y = (y - m1[i][None, :, None, None]) / jnp.sqrt(v1[i] + EPS)[None, :, None, None] \
            * g1[i][None, :, None, None] + b1[i][None, :, None, None]
        y = jnp.maximum(y, 0.0)
        y = jax.lax.conv_general_dilated(
            y, w1[i], window_strides=(1, 1), padding="VALID",
            rhs_dilation=(rate, rate),
            dimension_numbers=("NCHW", "OIHW", "NCHW"),
            precision=jax.lax.Precision.HIGHEST)
        y = (y - m2[i][None, :, None, None]) / jnp.sqrt(v2[i] + EPS)[None, :, None, None] \
            * g2[i][None, :, None, None] + b2[i][None, :, None, None]
        y = jnp.maximum(y, 0.0)
        outs.append(y)
    return jnp.concatenate(outs, axis=1)


if __name__ == "__main__":
    B, C, H, W = 2, 4, 16, 16
    depth = 32
    NB, D4 = len(RATES), depth // 4

    key = jax.random.PRNGKey(0)
    ks = jax.random.split(key, 11)
    x  = jax.random.normal(ks[0], (B, C, H, W), dtype=jnp.float32)
    w3 = jax.random.normal(ks[1], (NB, depth, C, 3, 3), dtype=jnp.float32) * 0.25
    w1 = jax.random.normal(ks[2], (NB, D4, depth, 1, 1), dtype=jnp.float32) * 0.25
    g1 = 0.5 + jax.random.uniform(ks[3], (NB, depth), dtype=jnp.float32)
    b1 = jax.random.normal(ks[4], (NB, depth), dtype=jnp.float32) * 0.1
    m1 = jax.random.normal(ks[5], (NB, depth), dtype=jnp.float32) * 0.1
    v1 = 0.5 + jax.random.uniform(ks[6], (NB, depth), dtype=jnp.float32)
    g2 = 0.5 + jax.random.uniform(ks[7], (NB, D4), dtype=jnp.float32)
    b2 = jax.random.normal(ks[8], (NB, D4), dtype=jnp.float32) * 0.1
    m2 = jax.random.normal(ks[9], (NB, D4), dtype=jnp.float32) * 0.1
    v2 = 0.5 + jax.random.uniform(ks[10], (NB, D4), dtype=jnp.float32)

    out = aspp_forward(x, w3, w1, g1, b1, m1, v1, g2, b2, m2, v2)
    out = jax.block_until_ready(out)

    ref = _reference(x, w3, w1, g1, b1, m1, v1, g2, b2, m2, v2)
    assert out.shape == (B, NB * D4, H, W)
    max_err = float(jnp.max(jnp.abs(out - ref)))
    assert jnp.allclose(out, ref, atol=2e-4, rtol=2e-4), f"mismatch, max_err={max_err}"
    print("KERNEL_OK")
</pallas_src>

<mosaic_0001>
module attributes {stable_mosaic.version = 11 : i64} {
  func.func @kernel(%arg0: i32, %arg1: memref<1x8x664xf32, #tpu.memory_space<vmem>>, %arg2: memref<4x32x72xf32, #tpu.memory_space<vmem>>, %arg3: memref<4x8x32xf32, #tpu.memory_space<vmem>>, %arg4: memref<4x32x1xf32, #tpu.memory_space<vmem>>, %arg5: memref<4x8x1xf32, #tpu.memory_space<vmem>>, %arg6: memref<4x2x256xf32, #tpu.memory_space<vmem>>, %arg7: memref<1x4x8x256xf32, #tpu.memory_space<vmem>>) attributes {dimension_semantics = [#tpu.dimension_semantics<parallel>], iteration_bounds = array<i64: 2>, scalar_prefetch = 0 : i64, scratch_operands = 0 : i64, tpu.core_type = #tpu.core_type<tc>, window_params = [{transform_indices = @transform_0, window_bounds = array<i64: 1, 8, 664>}, {pipeline_mode = #tpu.pipeline_mode<synchronous>, transform_indices = @transform_1, window_bounds = array<i64: 4, 32, 72>}, {pipeline_mode = #tpu.pipeline_mode<synchronous>, transform_indices = @transform_2, window_bounds = array<i64: 4, 8, 32>}, {pipeline_mode = #tpu.pipeline_mode<synchronous>, transform_indices = @transform_3, window_bounds = array<i64: 4, 32, 1>}, {pipeline_mode = #tpu.pipeline_mode<synchronous>, transform_indices = @transform_4, window_bounds = array<i64: 4, 8, 1>}, {pipeline_mode = #tpu.pipeline_mode<synchronous>, transform_indices = @transform_5, window_bounds = array<i64: 4, 2, 256>}, {transform_indices = @transform_6, window_bounds = array<i64: 1, 4, 8, 256>}]} {
    %c0 = arith.constant 0 : index
    %c0_0 = arith.constant 0 : index
    %c0_1 = arith.constant 0 : index
    %0 = vector.load %arg6[%c0, %c0_0, %c0_1] : memref<4x2x256xf32, #tpu.memory_space<vmem>>, vector<1x2x256xf32>
    %1 = vector.shape_cast %0 : vector<1x2x256xf32> to vector<2x256xf32>
    %2 = vector.extract_strided_slice %1 {offsets = [0, 0], sizes = [1, 256], strides = [1, 1]} : vector<2x256xf32> to vector<1x256xf32>
    %3 = vector.extract_strided_slice %1 {offsets = [1, 0], sizes = [1, 256], strides = [1, 1]} : vector<2x256xf32> to vector<1x256xf32>
    %c0_2 = arith.constant 0 : index
    %c0_3 = arith.constant 0 : index
    %c170 = arith.constant 170 : index
    %4 = vector.load %arg1[%c0_2, %c0_3, %c170] : memref<1x8x664xf32, #tpu.memory_space<vmem>>, vector<1x8x256xf32>
    %5 = vector.shape_cast %4 : vector<1x8x256xf32> to vector<8x256xf32>
    %6 = vector.broadcast %2 : vector<1x256xf32> to vector<8x256xf32>
    %7 = arith.mulf %5, %6 : vector<8x256xf32>
    %c0_4 = arith.constant 0 : index
    %c0_5 = arith.constant 0 : index
    %c172 = arith.constant 172 : index
    %8 = vector.load %arg1[%c0_4, %c0_5, %c172] : memref<1x8x664xf32, #tpu.memory_space<vmem>>, vector<1x8x256xf32>
    %9 = vector.shape_cast %8 : vector<1x8x256xf32> to vector<8x256xf32>
    %c0_6 = arith.constant 0 : index
    %c0_7 = arith.constant 0 : index
    %c174 = arith.constant 174 : index
    %10 = vector.load %arg1[%c0_6, %c0_7, %c174] : memref<1x8x664xf32, #tpu.memory_space<vmem>>, vector<1x8x256xf32>
    %11 = vector.shape_cast %10 : vector<1x8x256xf32> to vector<8x256xf32>
    %12 = vector.broadcast %3 : vector<1x256xf32> to vector<8x256xf32>
    %13 = arith.mulf %11, %12 : vector<8x256xf32>
    %c0_8 = arith.constant 0 : index
    %c0_9 = arith.constant 0 : index
    %c202 = arith.constant 202 : index
    %14 = vector.load %arg1[%c0_8, %c0_9, %c202] : memref<1x8x664xf32, #tpu.memory_space<vmem>>, vector<1x8x256xf32>
    %15 = vector.shape_cast %14 : vector<1x8x256xf32> to vector<8x256xf32>
    %16 = vector.broadcast %2 : vector<1x256xf32> to vector<8x256xf32>
    %17 = arith.mulf %15, %16 : vector<8x256xf32>
    %c0_10 = arith.constant 0 : index
    %c0_11 = arith.constant 0 : index
    %c204 = arith.constant 204 : index
    %18 = vector.load %arg1[%c0_10, %c0_11, %c204] : memref<1x8x664xf32, #tpu.memory_space<vmem>>, vector<1x8x256xf32>
    %19 = vector.shape_cast %18 : vector<1x8x256xf32> to vector<8x256xf32>
    %c0_12 = arith.constant 0 : index
    %c0_13 = arith.constant 0 : index
    %c206 = arith.constant 206 : index
    %20 = vector.load %arg1[%c0_12, %c0_13, %c206] : memref<1x8x664xf32, #tpu.memory_space<vmem>>, vector<1x8x256xf32>
    %21 = vector.shape_cast %20 : vector<1x8x256xf32> to vector<8x256xf32>
    %22 = vector.broadcast %3 : vector<1x256xf32> to vector<8x256xf32>
    %23 = arith.mulf %21, %22 : vector<8x256xf32>
    %c0_14 = arith.constant 0 : index
    %c0_15 = arith.constant 0 : index
    %c234 = arith.constant 234 : index
    %24 = vector.load %arg1[%c0_14, %c0_15, %c234] : memref<1x8x664xf32, #tpu.memory_space<vmem>>, vector<1x8x256xf32>
    %25 = vector.shape_cast %24 : vector<1x8x256xf32> to vector<8x256xf32>
    %26 = vector.broadcast %2 : vector<1x256xf32> to vector<8x256xf32>
    %27 = arith.mulf %25, %26 : vector<8x256xf32>
    %c0_16 = arith.constant 0 : index
    %c0_17 = arith.constant 0 : index
    %c236 = arith.constant 236 : index
    %28 = vector.load %arg1[%c0_16, %c0_17, %c236] : memref<1x8x664xf32, #tpu.memory_space<vmem>>, vector<1x8x256xf32>
    %29 = vector.shape_cast %28 : vector<1x8x256xf32> to vector<8x256xf32>
    %c0_18 = arith.constant 0 : index
    %c0_19 = arith.constant 0 : index
    %c238 = arith.constant 238 : index
    %30 = vector.load %arg1[%c0_18, %c0_19, %c238] : memref<1x8x664xf32, #tpu.memory_space<vmem>>, vector<1x8x256xf32>
    %31 = vector.shape_cast %30 : vector<1x8x256xf32> to vector<8x256xf32>
    %32 = vector.broadcast %3 : vector<1x256xf32> to vector<8x256xf32>
    %33 = arith.mulf %31, %32 : vector<8x256xf32>
    %34 = tpu.concatenate %7, %9, %13, %17, %19, %23, %27, %29, %33 in 0 : vector<8x256xf32>, vector<8x256xf32>, vector<8x256xf32>, vector<8x256xf32>, vector<8x256xf32>, vector<8x256xf32>, vector<8x256xf32>, vector<8x256xf32>, vector<8x256xf32> -> vector<72x256xf32>
    %c0_20 = arith.constant 0 : index
    %c0_21 = arith.constant 0 : index
    %c0_22 = arith.constant 0 : index
    %35 = vector.load %arg2[%c0_20, %c0_21, %c0_22] : memref<4x32x72xf32, #tpu.memory_space<vmem>>, vector<1x32x72xf32>
    %36 = vector.shape_cast %35 : vector<1x32x72xf32> to vector<32x72xf32>
    %cst = arith.constant dense<0.000000e+00> : vector<32x256xf32>
    %37 = tpu.matmul %36, %34, %cst {dimension_numbers = #tpu.dot_dimension_numbers<[1], [0], [0], [1], [0, 0, 1, 1], [], []>} : vector<32x72xf32>, vector<72x256xf32>, vector<32x256xf32> -> vector<32x256xf32>
    %c0_23 = arith.constant 0 : index
    %c0_24 = arith.constant 0 : index
    %c0_25 = arith.constant 0 : index
    %38 = vector.load %arg4[%c0_23, %c0_24, %c0_25] : memref<4x32x1xf32, #tpu.memory_space<vmem>>, vector<1x32x1xf32>
    %39 = vector.shape_cast %38 : vector<1x32x1xf32> to vector<32x1xf32>
    %40 = vector.broadcast %39 : vector<32x1xf32> to vector<32x256xf32>
    %41 = arith.addf %37, %40 : vector<32x256xf32>
    %cst_26 = arith.constant 0.000000e+00 : f32
    %42 = vector.broadcast %cst_26 : f32 to vector<32x256xf32>
    %43 = arith.maximumf %41, %42 : vector<32x256xf32>
    %c0_27 = arith.constant 0 : index
    %c0_28 = arith.constant 0 : index
    %c0_29 = arith.constant 0 : index
    %44 = vector.load %arg3[%c0_27, %c0_28, %c0_29] : memref<4x8x32xf32, #tpu.memory_space<vmem>>, vector<1x8x32xf32>
    %45 = vector.shape_cast %44 : vector<1x8x32xf32> to vector<8x32xf32>
    %cst_30 = arith.constant dense<0.000000e+00> : vector<8x256xf32>
    %46 = tpu.matmul %45, %43, %cst_30 {dimension_numbers = #tpu.dot_dimension_numbers<[1], [0], [0], [1], [0, 0, 1, 1], [], []>} : vector<8x32xf32>, vector<32x256xf32>, vector<8x256xf32> -> vector<8x256xf32>
    %c0_31 = arith.constant 0 : index
    %c0_32 = arith.constant 0 : index
    %c0_33 = arith.constant 0 : index
    %47 = vector.load %arg5[%c0_31, %c0_32, %c0_33] : memref<4x8x1xf32, #tpu.memory_space<vmem>>, vector<1x8x1xf32>
    %48 = vector.shape_cast %47 : vector<1x8x1xf32> to vector<8x1xf32>
    %49 = vector.broadcast %48 : vector<8x1xf32> to vector<8x256xf32>
    %50 = arith.addf %46, %49 : vector<8x256xf32>
    %cst_34 = arith.constant 0.000000e+00 : f32
    %51 = vector.broadcast %cst_34 : f32 to vector<8x256xf32>
    %52 = arith.maximumf %50, %51 : vector<8x256xf32>
    %c0_35 = arith.constant 0 : index
    %c0_36 = arith.constant 0 : index
    %c0_37 = arith.constant 0 : index
    %c0_38 = arith.constant 0 : index
    %53 = vector.load %arg7[%c0_35, %c0_36, %c0_37, %c0_38] : memref<1x4x8x256xf32, #tpu.memory_space<vmem>>, vector<1x1x8x256xf32>
    %54 = vector.shape_cast %53 : vector<1x1x8x256xf32> to vector<8x256xf32>
    %55 = vector.shape_cast %52 : vector<8x256xf32> to vector<1x1x8x256xf32>
    tpu.vector_store %arg7[%c0_35, %c0_36, %c0_37, %c0_38], %55 {strides = array<i32>} : memref<1x4x8x256xf32, #tpu.memory_space<vmem>>, vector<1x1x8x256xf32>,
    %c1 = arith.constant 1 : index
    %c0_39 = arith.constant 0 : index
    %c0_40 = arith.constant 0 : index
    %56 = vector.load %arg6[%c1, %c0_39, %c0_40] : memref<4x2x256xf32, #tpu.memory_space<vmem>>, vector<1x2x256xf32>
    %57 = vector.shape_cast %56 : vector<1x2x256xf32> to vector<2x256xf32>
    %58 = vector.extract_strided_slice %57 {offsets = [0, 0], sizes = [1, 256], strides = [1, 1]} : vector<2x256xf32> to vector<1x256xf32>
    %59 = vector.extract_strided_slice %57 {offsets = [1, 0], sizes = [1, 256], strides = [1, 1]} : vector<2x256xf32> to vector<1x256xf32>
    %c0_41 = arith.constant 0 : index
    %c0_42 = arith.constant 0 : index
    %c136 = arith.constant 136 : index
    %60 = vector.load %arg1[%c0_41, %c0_42, %c136] : memref<1x8x664xf32, #tpu.memory_space<vmem>>, vector<1x8x256xf32>
    %61 = vector.shape_cast %60 : vector<1x8x256xf32> to vector<8x256xf32>
    %62 = vector.broadcast %58 : vector<1x256xf32> to vector<8x256xf32>
    %63 = arith.mulf %61, %62 : vector<8x256xf32>
    %c0_43 = arith.constant 0 : index
    %c0_44 = arith.constant 0 : index
    %c140 = arith.constant 140 : index
    %64 = vector.load %arg1[%c0_43, %c0_44, %c140] : memref<1x8x664xf32, #tpu.memory_space<vmem>>, vector<1x8x256xf32>
    %65 = vector.shape_cast %64 : vector<1x8x256xf32> to vector<8x256xf32>
    %c0_45 = arith.constant 0 : index
    %c0_46 = arith.constant 0 : index
    %c144 = arith.constant 144 : index
    %66 = vector.load %arg1[%c0_45, %c0_46, %c144] : memref<1x8x664xf32, #tpu.memory_space<vmem>>, vector<1x8x256xf32>
    %67 = vector.shape_cast %66 : vector<1x8x256xf32> to vector<8x256xf32>
    %68 = vector.broadcast %59 : vector<1x256xf32> to vector<8x256xf32>
    %69 = arith.mulf %67, %68 : vector<8x256xf32>
    %c0_47 = arith.constant 0 : index
    %c0_48 = arith.constant 0 : index
    %c200 = arith.constant 200 : index
    %70 = vector.load %arg1[%c0_47, %c0_48, %c200] : memref<1x8x664xf32, #tpu.memory_space<vmem>>, vector<1x8x256xf32>
    %71 = vector.shape_cast %70 : vector<1x8x256xf32> to vector<8x256xf32>
    %72 = vector.broadcast %58 : vector<1x256xf32> to vector<8x256xf32>
    %73 = arith.mulf %71, %72 : vector<8x256xf32>
    %c0_49 = arith.constant 0 : index
    %c0_50 = arith.constant 0 : index
    %c204_51 = arith.constant 204 : index
    %74 = vector.load %arg1[%c0_49, %c0_50, %c204_51] : memref<1x8x664xf32, #tpu.memory_space<vmem>>, vector<1x8x256xf32>
    %75 = vector.shape_cast %74 : vector<1x8x256xf32> to vector<8x256xf32>
    %c0_52 = arith.constant 0 : index
    %c0_53 = arith.constant 0 : index
    %c208 = arith.constant 208 : index
    %76 = vector.load %arg1[%c0_52, %c0_53, %c208] : memref<1x8x664xf32, #tpu.memory_space<vmem>>, vector<1x8x256xf32>
    %77 = vector.shape_cast %76 : vector<1x8x256xf32> to vector<8x256xf32>
    %78 = vector.broadcast %59 : vector<1x256xf32> to vector<8x256xf32>
    %79 = arith.mulf %77, %78 : vector<8x256xf32>
    %c0_54 = arith.constant 0 : index
    %c0_55 = arith.constant 0 : index
    %c264 = arith.constant 264 : index
    %80 = vector.load %arg1[%c0_54, %c0_55, %c264] : memref<1x8x664xf32, #tpu.memory_space<vmem>>, vector<1x8x256xf32>
    %81 = vector.shape_cast %80 : vector<1x8x256xf32> to vector<8x256xf32>
    %82 = vector.broadcast %58 : vector<1x256xf32> to vector<8x256xf32>
    %83 = arith.mulf %81, %82 : vector<8x256xf32>
    %c0_56 = arith.constant 0 : index
    %c0_57 = arith.constant 0 : index
    %c268 = arith.constant 268 : index
    %84 = vector.load %arg1[%c0_56, %c0_57, %c268] : memref<1x8x664xf32, #tpu.memory_space<vmem>>, vector<1x8x256xf32>
    %85 = vector.shape_cast %84 : vector<1x8x256xf32> to vector<8x256xf32>
    %c0_58 = arith.constant 0 : index
    %c0_59 = arith.constant 0 : index
    %c272 = arith.constant 272 : index
    %86 = vector.load %arg1[%c0_58, %c0_59, %c272] : memref<1x8x664xf32, #tpu.memory_space<vmem>>, vector<1x8x256xf32>
    %87 = vector.shape_cast %86 : vector<1x8x256xf32> to vector<8x256xf32>
    %88 = vector.broadcast %59 : vector<1x256xf32> to vector<8x256xf32>
    %89 = arith.mulf %87, %88 : vector<8x256xf32>
    %90 = tpu.concatenate %63, %65, %69, %73, %75, %79, %83, %85, %89 in 0 : vector<8x256xf32>, vector<8x256xf32>, vector<8x256xf32>, vector<8x256xf32>, vector<8x256xf32>, vector<8x256xf32>, vector<8x256xf32>, vector<8x256xf32>, vector<8x256xf32> -> vector<72x256xf32>
    %c1_60 = arith.constant 1 : index
    %c0_61 = arith.constant 0 : index
    %c0_62 = arith.constant 0 : index
    %91 = vector.load %arg2[%c1_60, %c0_61, %c0_62] : memref<4x32x72xf32, #tpu.memory_space<vmem>>, vector<1x32x72xf32>
    %92 = vector.shape_cast %91 : vector<1x32x72xf32> to vector<32x72xf32>
    %cst_63 = arith.constant dense<0.000000e+00> : vector<32x256xf32>
    %93 = tpu.matmul %92, %90, %cst_63 {dimension_numbers = #tpu.dot_dimension_numbers<[1], [0], [0], [1], [0, 0, 1, 1], [], []>} : vector<32x72xf32>, vector<72x256xf32>, vector<32x256xf32> -> vector<32x256xf32>
    %c1_64 = arith.constant 1 : index
    %c0_65 = arith.constant 0 : index
    %c0_66 = arith.constant 0 : index
    %94 = vector.load %arg4[%c1_64, %c0_65, %c0_66] : memref<4x32x1xf32, #tpu.memory_space<vmem>>, vector<1x32x1xf32>
    %95 = vector.shape_cast %94 : vector<1x32x1xf32> to vector<32x1xf32>
    %96 = vector.broadcast %95 : vector<32x1xf32> to vector<32x256xf32>
    %97 = arith.addf %93, %96 : vector<32x256xf32>
    %cst_67 = arith.constant 0.000000e+00 : f32
    %98 = vector.broadcast %cst_67 : f32 to vector<32x256xf32>
    %99 = arith.maximumf %97, %98 : vector<32x256xf32>
    %c1_68 = arith.constant 1 : index
    %c0_69 = arith.constant 0 : index
    %c0_70 = arith.constant 0 : index
    %100 = vector.load %arg3[%c1_68, %c0_69, %c0_70] : memref<4x8x32xf32, #tpu.memory_space<vmem>>, vector<1x8x32xf32>
    %101 = vector.shape_cast %100 : vector<1x8x32xf32> to vector<8x32xf32>
    %cst_71 = arith.constant dense<0.000000e+00> : vector<8x256xf32>
    %102 = tpu.matmul %101, %99, %cst_71 {dimension_numbers = #tpu.dot_dimension_numbers<[1], [0], [0], [1], [0, 0, 1, 1], [], []>} : vector<8x32xf32>, vector<32x256xf32>, vector<8x256xf32> -> vector<8x256xf32>
    %c1_72 = arith.constant 1 : index
    %c0_73 = arith.constant 0 : index
    %c0_74 = arith.constant 0 : index
    %103 = vector.load %arg5[%c1_72, %c0_73, %c0_74] : memref<4x8x1xf32, #tpu.memory_space<vmem>>, vector<1x8x1xf32>
    %104 = vector.shape_cast %103 : vector<1x8x1xf32> to vector<8x1xf32>
    %105 = vector.broadcast %104 : vector<8x1xf32> to vector<8x256xf32>
    %106 = arith.addf %102, %105 : vector<8x256xf32>
    %cst_75 = arith.constant 0.000000e+00 : f32
    %107 = vector.broadcast %cst_75 : f32 to vector<8x256xf32>
    %108 = arith.maximumf %106, %107 : vector<8x256xf32>
    %c0_76 = arith.constant 0 : index
    %c1_77 = arith.constant 1 : index
    %c0_78 = arith.constant 0 : index
    %c0_79 = arith.constant 0 : index
    %109 = vector.load %arg7[%c0_76, %c1_77, %c0_78, %c0_79] : memref<1x4x8x256xf32, #tpu.memory_space<vmem>>, vector<1x1x8x256xf32>
    %110 = vector.shape_cast %109 : vector<1x1x8x256xf32> to vector<8x256xf32>
    %111 = vector.shape_cast %108 : vector<8x256xf32> to vector<1x1x8x256xf32>
    tpu.vector_store %arg7[%c0_76, %c1_77, %c0_78, %c0_79], %111 {strides = array<i32>} : memref<1x4x8x256xf32, #tpu.memory_space<vmem>>, vector<1x1x8x256xf32>,
    %c2 = arith.constant 2 : index
    %c0_80 = arith.constant 0 : index
    %c0_81 = arith.constant 0 : index
    %112 = vector.load %arg6[%c2, %c0_80, %c0_81] : memref<4x2x256xf32, #tpu.memory_space<vmem>>, vector<1x2x256xf32>
    %113 = vector.shape_cast %112 : vector<1x2x256xf32> to vector<2x256xf32>
    %114 = vector.extract_strided_slice %113 {offsets = [0, 0], sizes = [1, 256], strides = [1, 1]} : vector<2x256xf32> to vector<1x256xf32>
    %115 = vector.extract_strided_slice %113 {offsets = [1, 0], sizes = [1, 256], strides = [1, 1]} : vector<2x256xf32> to vector<1x256xf32>
    %c0_82 = arith.constant 0 : index
    %c0_83 = arith.constant 0 : index
    %c68 = arith.constant 68 : index
    %116 = vector.load %arg1[%c0_82, %c0_83, %c68] : memref<1x8x664xf32, #tpu.memory_space<vmem>>, vector<1x8x256xf32>
    %117 = vector.shape_cast %116 : vector<1x8x256xf32> to vector<8x256xf32>
    %118 = vector.broadcast %114 : vector<1x256xf32> to vector<8x256xf32>
    %119 = arith.mulf %117, %118 : vector<8x256xf32>
    %c0_84 = arith.constant 0 : index
    %c0_85 = arith.constant 0 : index
    %c76 = arith.constant 76 : index
    %120 = vector.load %arg1[%c0_84, %c0_85, %c76] : memref<1x8x664xf32, #tpu.memory_space<vmem>>, vector<1x8x256xf32>
    %121 = vector.shape_cast %120 : vector<1x8x256xf32> to vector<8x256xf32>
    %c0_86 = arith.constant 0 : index
    %c0_87 = arith.constant 0 : index
    %c84 = arith.constant 84 : index
    %122 = vector.load %arg1[%c0_86, %c0_87, %c84] : memref<1x8x664xf32, #tpu.memory_space<vmem>>, vector<1x8x256xf32>
    %123 = vector.shape_cast %122 : vector<1x8x256xf32> to vector<8x256xf32>
    %124 = vector.broadcast %115 : vector<1x256xf32> to vector<8x256xf32>
    %125 = arith.mulf %123, %124 : vector<8x256xf32>
    %c0_88 = arith.constant 0 : index
    %c0_89 = arith.constant 0 : index
    %c196 = arith.constant 196 : index
    %126 = vector.load %arg1[%c0_88, %c0_89, %c196] : memref<1x8x664xf32, #tpu.memory_space<vmem>>, vector<1x8x256xf32>
    %127 = vector.shape_cast %126 : vector<1x8x256xf32> to vector<8x256xf32>
    %128 = vector.broadcast %114 : vector<1x256xf32> to vector<8x256xf32>
    %129 = arith.mulf %127, %128 : vector<8x256xf32>
    %c0_90 = arith.constant 0 : index
    %c0_91 = arith.constant 0 : index
    %c204_92 = arith.constant 204 : index
    %130 = vector.load %arg1[%c0_90, %c0_91, %c204_92] : memref<1x8x664xf32, #tpu.memory_space<vmem>>, vector<1x8x256xf32>
    %131 = vector.shape_cast %130 : vector<1x8x256xf32> to vector<8x256xf32>
    %c0_93 = arith.constant 0 : index
    %c0_94 = arith.constant 0 : index
    %c212 = arith.constant 212 : index
    %132 = vector.load %arg1[%c0_93, %c0_94, %c212] : memref<1x8x664xf32, #tpu.memory_space<vmem>>, vector<1x8x256xf32>
    %133 = vector.shape_cast %132 : vector<1x8x256xf32> to vector<8x256xf32>
    %134 = vector.broadcast %115 : vector<1x256xf32> to vector<8x256xf32>
    %135 = arith.mulf %133, %134 : vector<8x256xf32>
    %c0_95 = arith.constant 0 : index
    %c0_96 = arith.constant 0 : index
    %c324 = arith.constant 324 : index
    %136 = vector.load %arg1[%c0_95, %c0_96, %c324] : memref<1x8x664xf32, #tpu.memory_space<vmem>>, vector<1x8x256xf32>
    %137 = vector.shape_cast %136 : vector<1x8x256xf32> to vector<8x256xf32>
    %138 = vector.broadcast %114 : vector<1x256xf32> to vector<8x256xf32>
    %139 = arith.mulf %137, %138 : vector<8x256xf32>
    %c0_97 = arith.constant 0 : index
    %c0_98 = arith.constant 0 : index
    %c332 = arith.constant 332 : index
    %140 = vector.load %arg1[%c0_97, %c0_98, %c332] : memref<1x8x664xf32, #tpu.memory_space<vmem>>, vector<1x8x256xf32>
    %141 = vector.shape_cast %140 : vector<1x8x256xf32> to vector<8x256xf32>
    %c0_99 = arith.constant 0 : index
    %c0_100 = arith.constant 0 : index
    %c340 = arith.constant 340 : index
    %142 = vector.load %arg1[%c0_99, %c0_100, %c340] : memref<1x8x664xf32, #tpu.memory_space<vmem>>, vector<1x8x256xf32>
    %143 = vector.shape_cast %142 : vector<1x8x256xf32> to vector<8x256xf32>
    %144 = vector.broadcast %115 : vector<1x256xf32> to vector<8x256xf32>
    %145 = arith.mulf %143, %144 : vector<8x256xf32>
    %146 = tpu.concatenate %119, %121, %125, %129, %131, %135, %139, %141, %145 in 0 : vector<8x256xf32>, vector<8x256xf32>, vector<8x256xf32>, vector<8x256xf32>, vector<8x256xf32>, vector<8x256xf32>, vector<8x256xf32>, vector<8x256xf32>, vector<8x256xf32> -> vector<72x256xf32>
    %c2_101 = arith.constant 2 : index
    %c0_102 = arith.constant 0 : index
    %c0_103 = arith.constant 0 : index
    %147 = vector.load %arg2[%c2_101, %c0_102, %c0_103] : memref<4x32x72xf32, #tpu.memory_space<vmem>>, vector<1x32x72xf32>
    %148 = vector.shape_cast %147 : vector<1x32x72xf32> to vector<32x72xf32>
    %cst_104 = arith.constant dense<0.000000e+00> : vector<32x256xf32>
    %149 = tpu.matmul %148, %146, %cst_104 {dimension_numbers = #tpu.dot_dimension_numbers<[1], [0], [0], [1], [0, 0, 1, 1], [], []>} : vector<32x72xf32>, vector<72x256xf32>, vector<32x256xf32> -> vector<32x256xf32>
    %c2_105 = arith.constant 2 : index
    %c0_106 = arith.constant 0 : index
    %c0_107 = arith.constant 0 : index
    %150 = vector.load %arg4[%c2_105, %c0_106, %c0_107] : memref<4x32x1xf32, #tpu.memory_space<vmem>>, vector<1x32x1xf32>
    %151 = vector.shape_cast %150 : vector<1x32x1xf32> to vector<32x1xf32>
    %152 = vector.broadcast %151 : vector<32x1xf32> to vector<32x256xf32>
    %153 = arith.addf %149, %152 : vector<32x256xf32>
    %cst_108 = arith.constant 0.000000e+00 : f32
    %154 = vector.broadcast %cst_108 : f32 to vector<32x256xf32>
    %155 = arith.maximumf %153, %154 : vector<32x256xf32>
    %c2_109 = arith.constant 2 : index
    %c0_110 = arith.constant 0 : index
    %c0_111 = arith.constant 0 : index
    %156 = vector.load %arg3[%c2_109, %c0_110, %c0_111] : memref<4x8x32xf32, #tpu.memory_space<vmem>>, vector<1x8x32xf32>
    %157 = vector.shape_cast %156 : vector<1x8x32xf32> to vector<8x32xf32>
    %cst_112 = arith.constant dense<0.000000e+00> : vector<8x256xf32>
    %158 = tpu.matmul %157, %155, %cst_112 {dimension_numbers = #tpu.dot_dimension_numbers<[1], [0], [0], [1], [0, 0, 1, 1], [], []>} : vector<8x32xf32>, vector<32x256xf32>, vector<8x256xf32> -> vector<8x256xf32>
    %c2_113 = arith.constant 2 : index
    %c0_114 = arith.constant 0 : index
    %c0_115 = arith.constant 0 : index
    %159 = vector.load %arg5[%c2_113, %c0_114, %c0_115] : memref<4x8x1xf32, #tpu.memory_space<vmem>>, vector<1x8x1xf32>
    %160 = vector.shape_cast %159 : vector<1x8x1xf32> to vector<8x1xf32>
    %161 = vector.broadcast %160 : vector<8x1xf32> to vector<8x256xf32>
    %162 = arith.addf %158, %161 : vector<8x256xf32>
    %cst_116 = arith.constant 0.000000e+00 : f32
    %163 = vector.broadcast %cst_116 : f32 to vector<8x256xf32>
    %164 = arith.maximumf %162, %163 : vector<8x256xf32>
    %c0_117 = arith.constant 0 : index
    %c2_118 = arith.constant 2 : index
    %c0_119 = arith.constant 0 : index
    %c0_120 = arith.constant 0 : index
    %165 = vector.load %arg7[%c0_117, %c2_118, %c0_119, %c0_120] : memref<1x4x8x256xf32, #tpu.memory_space<vmem>>, vector<1x1x8x256xf32>
    %166 = vector.shape_cast %165 : vector<1x1x8x256xf32> to vector<8x256xf32>
    %167 = vector.shape_cast %164 : vector<8x256xf32> to vector<1x1x8x256xf32>
    tpu.vector_store %arg7[%c0_117, %c2_118, %c0_119, %c0_120], %167 {strides = array<i32>} : memref<1x4x8x256xf32, #tpu.memory_space<vmem>>, vector<1x1x8x256xf32>,
    %c3 = arith.constant 3 : index
    %c0_121 = arith.constant 0 : index
    %c0_122 = arith.constant 0 : index
    %168 = vector.load %arg6[%c3, %c0_121, %c0_122] : memref<4x2x256xf32, #tpu.memory_space<vmem>>, vector<1x2x256xf32>
    %169 = vector.shape_cast %168 : vector<1x2x256xf32> to vector<2x256xf32>
    %170 = vector.extract_strided_slice %169 {offsets = [0, 0], sizes = [1, 256], strides = [1, 1]} : vector<2x256xf32> to vector<1x256xf32>
    %171 = vector.extract_strided_slice %169 {offsets = [1, 0], sizes = [1, 256], strides = [1, 1]} : vector<2x256xf32> to vector<1x256xf32>
    %c0_123 = arith.constant 0 : index
    %c0_124 = arith.constant 0 : index
    %c0_125 = arith.constant 0 : index
    %172 = vector.load %arg1[%c0_123, %c0_124, %c0_125] : memref<1x8x664xf32, #tpu.memory_space<vmem>>, vector<1x8x256xf32>
    %173 = vector.shape_cast %172 : vector<1x8x256xf32> to vector<8x256xf32>
    %174 = vector.broadcast %170 : vector<1x256xf32> to vector<8x256xf32>
    %175 = arith.mulf %173, %174 : vector<8x256xf32>
    %c0_126 = arith.constant 0 : index
    %c0_127 = arith.constant 0 : index
    %c12 = arith.constant 12 : index
    %176 = vector.load %arg1[%c0_126, %c0_127, %c12] : memref<1x8x664xf32, #tpu.memory_space<vmem>>, vector<1x8x256xf32>
    %177 = vector.shape_cast %176 : vector<1x8x256xf32> to vector<8x256xf32>
    %c0_128 = arith.constant 0 : index
    %c0_129 = arith.constant 0 : index
    %c24 = arith.constant 24 : index
    %178 = vector.load %arg1[%c0_128, %c0_129, %c24] : memref<1x8x664xf32, #tpu.memory_space<vmem>>, vector<1x8x256xf32>
    %179 = vector.shape_cast %178 : vector<1x8x256xf32> to vector<8x256xf32>
    %180 = vector.broadcast %171 : vector<1x256xf32> to vector<8x256xf32>
    %181 = arith.mulf %179, %180 : vector<8x256xf32>
    %c0_130 = arith.constant 0 : index
    %c0_131 = arith.constant 0 : index
    %c192 = arith.constant 192 : index
    %182 = vector.load %arg1[%c0_130, %c0_131, %c192] : memref<1x8x664xf32, #tpu.memory_space<vmem>>, vector<1x8x256xf32>
    %183 = vector.shape_cast %182 : vector<1x8x256xf32> to vector<8x256xf32>
    %184 = vector.broadcast %170 : vector<1x256xf32> to vector<8x256xf32>
    %185 = arith.mulf %183, %184 : vector<8x256xf32>
    %c0_132 = arith.constant 0 : index
    %c0_133 = arith.constant 0 : index
    %c204_134 = arith.constant 204 : index
    %186 = vector.load %arg1[%c0_132, %c0_133, %c204_134] : memref<1x8x664xf32, #tpu.memory_space<vmem>>, vector<1x8x256xf32>
    %187 = vector.shape_cast %186 : vector<1x8x256xf32> to vector<8x256xf32>
    %c0_135 = arith.constant 0 : index
    %c0_136 = arith.constant 0 : index
    %c216 = arith.constant 216 : index
    %188 = vector.load %arg1[%c0_135, %c0_136, %c216] : memref<1x8x664xf32, #tpu.memory_space<vmem>>, vector<1x8x256xf32>
    %189 = vector.shape_cast %188 : vector<1x8x256xf32> to vector<8x256xf32>
    %190 = vector.broadcast %171 : vector<1x256xf32> to vector<8x256xf32>
    %191 = arith.mulf %189, %190 : vector<8x256xf32>
    %c0_137 = arith.constant 0 : index
    %c0_138 = arith.constant 0 : index
    %c384 = arith.constant 384 : index
    %192 = vector.load %arg1[%c0_137, %c0_138, %c384] : memref<1x8x664xf32, #tpu.memory_space<vmem>>, vector<1x8x256xf32>
    %193 = vector.shape_cast %192 : vector<1x8x256xf32> to vector<8x256xf32>
    %194 = vector.broadcast %170 : vector<1x256xf32> to vector<8x256xf32>
    %195 = arith.mulf %193, %194 : vector<8x256xf32>
    %c0_139 = arith.constant 0 : index
    %c0_140 = arith.constant 0 : index
    %c396 = arith.constant 396 : index
    %196 = vector.load %arg1[%c0_139, %c0_140, %c396] : memref<1x8x664xf32, #tpu.memory_space<vmem>>, vector<1x8x256xf32>
    %197 = vector.shape_cast %196 : vector<1x8x256xf32> to vector<8x256xf32>
    %c0_141 = arith.constant 0 : index
    %c0_142 = arith.constant 0 : index
    %c408 = arith.constant 408 : index
    %198 = vector.load %arg1[%c0_141, %c0_142, %c408] : memref<1x8x664xf32, #tpu.memory_space<vmem>>, vector<1x8x256xf32>
    %199 = vector.shape_cast %198 : vector<1x8x256xf32> to vector<8x256xf32>
    %200 = vector.broadcast %171 : vector<1x256xf32> to vector<8x256xf32>
    %201 = arith.mulf %199, %200 : vector<8x256xf32>
    %202 = tpu.concatenate %175, %177, %181, %185, %187, %191, %195, %197, %201 in 0 : vector<8x256xf32>, vector<8x256xf32>, vector<8x256xf32>, vector<8x256xf32>, vector<8x256xf32>, vector<8x256xf32>, vector<8x256xf32>, vector<8x256xf32>, vector<8x256xf32> -> vector<72x256xf32>
    %c3_143 = arith.constant 3 : index
    %c0_144 = arith.constant 0 : index
    %c0_145 = arith.constant 0 : index
    %203 = vector.load %arg2[%c3_143, %c0_144, %c0_145] : memref<4x32x72xf32, #tpu.memory_space<vmem>>, vector<1x32x72xf32>
    %204 = vector.shape_cast %203 : vector<1x32x72xf32> to vector<32x72xf32>
    %cst_146 = arith.constant dense<0.000000e+00> : vector<32x256xf32>
    %205 = tpu.matmul %204, %202, %cst_146 {dimension_numbers = #tpu.dot_dimension_numbers<[1], [0], [0], [1], [0, 0, 1, 1], [], []>} : vector<32x72xf32>, vector<72x256xf32>, vector<32x256xf32> -> vector<32x256xf32>
    %c3_147 = arith.constant 3 : index
    %c0_148 = arith.constant 0 : index
    %c0_149 = arith.constant 0 : index
    %206 = vector.load %arg4[%c3_147, %c0_148, %c0_149] : memref<4x32x1xf32, #tpu.memory_space<vmem>>, vector<1x32x1xf32>
    %207 = vector.shape_cast %206 : vector<1x32x1xf32> to vector<32x1xf32>
    %208 = vector.broadcast %207 : vector<32x1xf32> to vector<32x256xf32>
    %209 = arith.addf %205, %208 : vector<32x256xf32>
    %cst_150 = arith.constant 0.000000e+00 : f32
    %210 = vector.broadcast %cst_150 : f32 to vector<32x256xf32>
    %211 = arith.maximumf %209, %210 : vector<32x256xf32>
    %c3_151 = arith.constant 3 : index
    %c0_152 = arith.constant 0 : index
    %c0_153 = arith.constant 0 : index
    %212 = vector.load %arg3[%c3_151, %c0_152, %c0_153] : memref<4x8x32xf32, #tpu.memory_space<vmem>>, vector<1x8x32xf32>
    %213 = vector.shape_cast %212 : vector<1x8x32xf32> to vector<8x32xf32>
    %cst_154 = arith.constant dense<0.000000e+00> : vector<8x256xf32>
    %214 = tpu.matmul %213, %211, %cst_154 {dimension_numbers = #tpu.dot_dimension_numbers<[1], [0], [0], [1], [0, 0, 1, 1], [], []>} : vector<8x32xf32>, vector<32x256xf32>, vector<8x256xf32> -> vector<8x256xf32>
    %c3_155 = arith.constant 3 : index
    %c0_156 = arith.constant 0 : index
    %c0_157 = arith.constant 0 : index
    %215 = vector.load %arg5[%c3_155, %c0_156, %c0_157] : memref<4x8x1xf32, #tpu.memory_space<vmem>>, vector<1x8x1xf32>
    %216 = vector.shape_cast %215 : vector<1x8x1xf32> to vector<8x1xf32>
    %217 = vector.broadcast %216 : vector<8x1xf32> to vector<8x256xf32>
    %218 = arith.addf %214, %217 : vector<8x256xf32>
    %cst_158 = arith.constant 0.000000e+00 : f32
    %219 = vector.broadcast %cst_158 : f32 to vector<8x256xf32>
    %220 = arith.maximumf %218, %219 : vector<8x256xf32>
    %c0_159 = arith.constant 0 : index
    %c3_160 = arith.constant 3 : index
    %c0_161 = arith.constant 0 : index
    %c0_162 = arith.constant 0 : index
    %221 = vector.load %arg7[%c0_159, %c3_160, %c0_161, %c0_162] : memref<1x4x8x256xf32, #tpu.memory_space<vmem>>, vector<1x1x8x256xf32>
    %222 = vector.shape_cast %221 : vector<1x1x8x256xf32> to vector<8x256xf32>
    %223 = vector.shape_cast %220 : vector<8x256xf32> to vector<1x1x8x256xf32>
    tpu.vector_store %arg7[%c0_159, %c3_160, %c0_161, %c0_162], %223 {strides = array<i32>} : memref<1x4x8x256xf32, #tpu.memory_space<vmem>>, vector<1x1x8x256xf32>,
    return
  }
  func.func @transform_0(%arg0: i32) -> (i32, i32, i32) {
    %c0_i32 = arith.constant 0 : i32
    %c0_i32_0 = arith.constant 0 : i32
    %c0_i32_1 = arith.constant 0 : i32
    return %arg0, %c0_i32, %c0_i32_0 : i32, i32, i32
  }
  func.func @transform_1(%arg0: i32) -> (i32, i32, i32) {
    %c0_i32 = arith.constant 0 : i32
    %c0_i32_0 = arith.constant 0 : i32
    %c0_i32_1 = arith.constant 0 : i32
    %c0_i32_2 = arith.constant 0 : i32
    return %c0_i32, %c0_i32_0, %c0_i32_1 : i32, i32, i32
  }
  func.func @transform_2(%arg0: i32) -> (i32, i32, i32) {
    %c0_i32 = arith.constant 0 : i32
    %c0_i32_0 = arith.constant 0 : i32
    %c0_i32_1 = arith.constant 0 : i32
    %c0_i32_2 = arith.constant 0 : i32
    return %c0_i32, %c0_i32_0, %c0_i32_1 : i32, i32, i32
  }
  func.func @transform_3(%arg0: i32) -> (i32, i32, i32) {
    %c0_i32 = arith.constant 0 : i32
    %c0_i32_0 = arith.constant 0 : i32
    %c0_i32_1 = arith.constant 0 : i32
    %c0_i32_2 = arith.constant 0 : i32
    return %c0_i32, %c0_i32_0, %c0_i32_1 : i32, i32, i32
  }
  func.func @transform_4(%arg0: i32) -> (i32, i32, i32) {
    %c0_i32 = arith.constant 0 : i32
    %c0_i32_0 = arith.constant 0 : i32
    %c0_i32_1 = arith.constant 0 : i32
    %c0_i32_2 = arith.constant 0 : i32
    return %c0_i32, %c0_i32_0, %c0_i32_1 : i32, i32, i32
  }
  func.func @transform_5(%arg0: i32) -> (i32, i32, i32) {
    %c0_i32 = arith.constant 0 : i32
    %c0_i32_0 = arith.constant 0 : i32
    %c0_i32_1 = arith.constant 0 : i32
    %c0_i32_2 = arith.constant 0 : i32
    return %c0_i32, %c0_i32_0, %c0_i32_1 : i32, i32, i32
  }
  func.func @transform_6(%arg0: i32) -> (i32, i32, i32, i32) {
    %c0_i32 = arith.constant 0 : i32
    %c0_i32_0 = arith.constant 0 : i32
    %c0_i32_1 = arith.constant 0 : i32
    %c0_i32_2 = arith.constant 0 : i32
    return %arg0, %c0_i32, %c0_i32_0, %c0_i32_1 : i32, i32, i32, i32
  }
}

</mosaic_0001>

<llo_original>
// kernel: tpu_custom_call.1
$region0: #{tpu_custom_call.1}
  #allocation0 [shape = 'u32[]', space=smem, size = 0x4, offset = 0x4, fixed_abs, tag = 'smem constant byte address 0x4 - core index']
  #allocation1 [shape = 'u32[72,128]{1,0:T(1,128)}', space=vmem, size = 0x9000, scoped, tag = 'internal scratch']
  %s0 = inlined_call_operand.hbm [shape: f32[2,8,664], index: 0, kind: input, shape index: {}]
  %s1 = inlined_call_operand.vmem [shape: f32[4,32,72], index: 1, kind: input, shape index: {}]
  %s2 = inlined_call_operand.vmem [shape: f32[4,8,32], index: 2, kind: input, shape index: {}]
  %s3 = inlined_call_operand.vmem [shape: f32[4,32,1], index: 3, kind: input, shape index: {}]
  %s4 = inlined_call_operand.vmem [shape: f32[4,8,1], index: 4, kind: input, shape index: {}]
  %s5 = inlined_call_operand.hbm [shape: f32[4,2,256], index: 5, kind: input, shape index: {}]
  %s6 = inlined_call_operand.hbm [shape: f32[2,4,8,256], index: 6, kind: output, shape index: {}]
  %s7 = sld [smem:[#allocation0]]
  $region65: #{tpu_custom_call.1} parent=0
    _
  %s9 = ssub.s32 1, %s7
  %s10 = scalar_select 0, %s9, %s7
  $region1: #{tpu_custom_call.1} parent=0
    #allocation2 [shape = 'u8[49152]{0}', space=vmem, size = 0xc000, scoped, tag = 'input window, operand 0']
    #allocation3 [shape = 's32[2]{0}', space=sflag, size = 0x8, scoped, tag = 'scoped memory for tpu_custom_call.1']
    #allocation4 [shape = 's32[2]{0}', space=sflag, size = 0x8, scoped, tag = 'scoped memory for tpu_custom_call.1']
    #allocation5 [shape = 'u8[8192]{0}', space=vmem, size = 0x2000, scoped, tag = 'input window, operand 5, single buffered']
    #allocation6 [shape = 's32[1]{0}', space=sflag, size = 0x4, scoped, tag = 'scoped memory for tpu_custom_call.1']
    #allocation7 [shape = 'u8[65536]{0}', space=vmem, size = 0x10000, scoped, tag = 'output window, operand 0']
    %11 = vsyncpa [#allocation3], 0
    %s12 = scalar_lea.sflag [#allocation3], 1
    %13 = vsyncpa %s12, 0
    %14 = vsyncpa [#allocation6], 0
    %15 = vsyncpa [#allocation4], 0
    %s16 = scalar_lea.sflag [#allocation4], 1
    %17 = vsyncpa %s16, 0
    loop: start=0, step=1, limit=4
    $region2: #{tpu_custom_call.1} parent=1 // loop_pre_header
      _
    $region3: #{tpu_custom_call.1} parent=1 // loop_header
      %s19 = sphi 0, %s23
      %p20 = scmp.ge.s32.totalorder %s19, 4
      %s29 = sphi 0, %s31
      %s32 = sphi 0, %s29
      %s33 = sphi 0, %s32
      %s49 = sphi 0, %s33
      %s53 = sphi 0, %s53
      %s55 = sphi 0, %s53
      %s56 = sphi 0, %s55
      %s70 = sphi 0, %s56
      %s74 = sphi 0, %s74
      %s76 = sphi 0, %s74
      %s77 = sphi 0, %s76
      %s91 = sphi 0, %s77
      %s95 = sphi 0, %s95
      %s97 = sphi 0, %s95
      %s98 = sphi 0, %s97
      %s112 = sphi 0, %s98
      %s116 = sphi 0, %s116
      %s118 = sphi 0, %s116
      %s119 = sphi 0, %s118
      %s133 = sphi 0, %s119
      %s137 = sphi 0, %s137
      %s139 = sphi 0, %s137
      %s140 = sphi 0, %s139
      %s154 = sphi 0, %s140
      %s160 = sphi 0, %s162
      %s163 = sphi 0, %s160
      %s164 = sphi 0, %s163
      %s180 = sphi 0, %s164
    $region4: #{tpu_custom_call.1} parent=1 // loop_header_branch
      %22 = sbr.rel (%p20) target = $region8
    $region5: #{tpu_custom_call.1} parent=1 // loop_body
      %s24 = ssub.s32 %s19, 1
      %s25 = ssub.s32 %s19, 2
      %s26 = sadd.s32 %s19, 1
      %s27 = ssub.s32 %s19, %s26
      %p28 = scmp.eq.s32.totalorder %s27, 0
      %s30 = sadd.s32 %s29, 1
      %s31 = scalar_select %p28, %s29, %s30
      %p34 = pneg %p28
      %p35 = scmp.eq.s32.totalorder %s19, 1
      %p36 = por %p34, %p35
      %p37 = scmp.ne.s32.totalorder %s29, %s32
      %p38 = scmp.eq.s32.totalorder %s19, 0
      %p39 = por %p37, %p38
      %p40 = scmp.ne.s32.totalorder %s29, %s32
      %p41 = scmp.eq.s32.totalorder %s24, 1
      %p42 = por %p40, %p41
      %p43 = scmp.ne.s32.totalorder %s32, %s33
      %p44 = scmp.eq.s32.totalorder %s24, 0
      %p45 = por %p43, %p44
      %p46 = scmp.ne.s32.totalorder %s32, %s33
      %p47 = scmp.eq.s32.totalorder %s25, 1
      %p48 = por %p46, %p47
      %p50 = scmp.ne.s32.totalorder %s33, %s49
      %p51 = scmp.eq.s32.totalorder %s25, 0
      %p52 = por %p50, %p51
      %s54 = sadd.s32 %s53, 1
      %p57 = scmp.eq.s32.totalorder %s19, 1
      %p58 = scmp.ne.s32.totalorder %s53, %s55
      %p59 = scmp.eq.s32.totalorder %s19, 0
      %p60 = por %p58, %p59
      %p61 = scmp.ne.s32.totalorder %s53, %s55
      %p62 = scmp.eq.s32.totalorder %s24, 1
      %p63 = por %p61, %p62
      %p64 = scmp.ne.s32.totalorder %s55, %s56
      %p65 = scmp.eq.s32.totalorder %s24, 0
      %p66 = por %p64, %p65
      %p67 = scmp.ne.s32.totalorder %s55, %s56
      %p68 = scmp.eq.s32.totalorder %s25, 1
      %p69 = por %p67, %p68
      %p71 = scmp.ne.s32.totalorder %s56, %s70
      %p72 = scmp.eq.s32.totalorder %s25, 0
      %p73 = por %p71, %p72
      %s75 = sadd.s32 %s74, 1
      %p78 = scmp.eq.s32.totalorder %s19, 1
      %p79 = scmp.ne.s32.totalorder %s74, %s76
      %p80 = scmp.eq.s32.totalorder %s19, 0
      %p81 = por %p79, %p80
      %p82 = scmp.ne.s32.totalorder %s74, %s76
      %p83 = scmp.eq.s32.totalorder %s24, 1
      %p84 = por %p82, %p83
      %p85 = scmp.ne.s32.totalorder %s76, %s77
      %p86 = scmp.eq.s32.totalorder %s24, 0
      %p87 = por %p85, %p86
      %p88 = scmp.ne.s32.totalorder %s76, %s77
      %p89 = scmp.eq.s32.totalorder %s25, 1
      %p90 = por %p88, %p89
      %p92 = scmp.ne.s32.totalorder %s77, %s91
      %p93 = scmp.eq.s32.totalorder %s25, 0
      %p94 = por %p92, %p93
      %s96 = sadd.s32 %s95, 1
      %p99 = scmp.eq.s32.totalorder %s19, 1
      %p100 = scmp.ne.s32.totalorder %s95, %s97
      %p101 = scmp.eq.s32.totalorder %s19, 0
      %p102 = por %p100, %p101
      %p103 = scmp.ne.s32.totalorder %s95, %s97
      %p104 = scmp.eq.s32.totalorder %s24, 1
      %p105 = por %p103, %p104
      %p106 = scmp.ne.s32.totalorder %s97, %s98
      %p107 = scmp.eq.s32.totalorder %s24, 0
      %p108 = por %p106, %p107
      %p109 = scmp.ne.s32.totalorder %s97, %s98
      %p110 = scmp.eq.s32.totalorder %s25, 1
      %p111 = por %p109, %p110
      %p113 = scmp.ne.s32.totalorder %s98, %s112
      %p114 = scmp.eq.s32.totalorder %s25, 0
      %p115 = por %p113, %p114
      %s117 = sadd.s32 %s116, 1
      %p120 = scmp.eq.s32.totalorder %s19, 1
      %p121 = scmp.ne.s32.totalorder %s116, %s118
      %p122 = scmp.eq.s32.totalorder %s19, 0
      %p123 = por %p121, %p122
      %p124 = scmp.ne.s32.totalorder %s116, %s118
      %p125 = scmp.eq.s32.totalorder %s24, 1
      %p126 = por %p124, %p125
      %p127 = scmp.ne.s32.totalorder %s118, %s119
      %p128 = scmp.eq.s32.totalorder %s24, 0
      %p129 = por %p127, %p128
      %p130 = scmp.ne.s32.totalorder %s118, %s119
      %p131 = scmp.eq.s32.totalorder %s25, 1
      %p132 = por %p130, %p131
      %p134 = scmp.ne.s32.totalorder %s119, %s133
      %p135 = scmp.eq.s32.totalorder %s25, 0
      %p136 = por %p134, %p135
      %s138 = sadd.s32 %s137, 1
      %p141 = scmp.eq.s32.totalorder %s19, 1
      %p142 = scmp.ne.s32.totalorder %s137, %s139
      %p143 = scmp.eq.s32.totalorder %s19, 0
      %p144 = por %p142, %p143
      %p145 = scmp.ne.s32.totalorder %s137, %s139
      %p146 = scmp.eq.s32.totalorder %s24, 1
      %p147 = por %p145, %p146
      %p148 = scmp.ne.s32.totalorder %s139, %s140
      %p149 = scmp.eq.s32.totalorder %s24, 0
      %p150 = por %p148, %p149
      %p151 = scmp.ne.s32.totalorder %s139, %s140
      %p152 = scmp.eq.s32.totalorder %s25, 1
      %p153 = por %p151, %p152
      %p155 = scmp.ne.s32.totalorder %s140, %s154
      %p156 = scmp.eq.s32.totalorder %s25, 0
      %p157 = por %p155, %p156
      %s158 = ssub.s32 %s19, %s26
      %p159 = scmp.eq.s32.totalorder %s158, 0
      %s161 = sadd.s32 %s160, 1
      %s162 = scalar_select %p159, %s160, %s161
      %p165 = pneg %p159
      %p166 = scmp.eq.s32.totalorder %s19, 1
      %p167 = por %p165, %p166
      %p168 = scmp.ne.s32.totalorder %s160, %s163
      %p169 = scmp.eq.s32.totalorder %s19, 0
      %p170 = por %p168, %p169
      %p171 = scmp.ne.s32.totalorder %s160, %s163
      %p172 = scmp.eq.s32.totalorder %s24, 1
      %p173 = por %p171, %p172
      %p174 = scmp.ne.s32.totalorder %s163, %s164
      %p175 = scmp.eq.s32.totalorder %s24, 0
      %p176 = por %p174, %p175
      %p177 = scmp.ne.s32.totalorder %s163, %s164
      %p178 = scmp.eq.s32.totalorder %s25, 1
      %p179 = por %p177, %p178
      %p181 = scmp.ne.s32.totalorder %s164, %s180
      %p182 = scmp.eq.s32.totalorder %s25, 0
      %p183 = por %p181, %p182
      %p184 = scmp.le.s32.totalorder 1, %s19
      %p185 = scmp.lt.s32.totalorder %s19, 3
      %p186 = pnand %p184, %p185
      %p187 = pneg %p186
      // Predicated region
      $region9: #{tpu_custom_call.1} parent=5 // pred_check
        _
      $region10: #{tpu_custom_call.1} parent=5 // pred_check_branch
        %189 = sbr.rel (%p186) target = $region12
      $region11: #{tpu_custom_call.1} parent=5 // pred_region
        %s190 = ssub.s32 %s19, 1
        // Predicated region
        $region13: #{tpu_custom_call.1} parent=11 // pred_check
          %p191 = pneg %p66
        $region14: #{tpu_custom_call.1} parent=11 // pred_check_branch
          %193 = sbr.rel (%p191) target = $region16
        $region15: #{tpu_custom_call.1} parent=11 // pred_region
          _
        $region16: #{tpu_custom_call.1} parent=11 // pred_fallthru
          _
        // Predicated region
        $region17: #{tpu_custom_call.1} parent=11 // pred_check
          %p194 = pneg %p87
        $region18: #{tpu_custom_call.1} parent=11 // pred_check_branch
          %196 = sbr.rel (%p194) target = $region20
        $region19: #{tpu_custom_call.1} parent=11 // pred_region
          _
        $region20: #{tpu_custom_call.1} parent=11 // pred_fallthru
          _
        // Predicated region
        $region21: #{tpu_custom_call.1} parent=11 // pred_check
          %p197 = pneg %p108
        $region22: #{tpu_custom_call.1} parent=11 // pred_check_branch
          %199 = sbr.rel (%p197) target = $region24
        $region23: #{tpu_custom_call.1} parent=11 // pred_region
          _
        $region24: #{tpu_custom_call.1} parent=11 // pred_fallthru
          _
        // Predicated region
        $region25: #{tpu_custom_call.1} parent=11 // pred_check
          %p200 = pneg %p129
        $region26: #{tpu_custom_call.1} parent=11 // pred_check_branch
          %202 = sbr.rel (%p200) target = $region28
        $region27: #{tpu_custom_call.1} parent=11 // pred_region
          _
        $region28: #{tpu_custom_call.1} parent=11 // pred_fallthru
          _
        // Predicated region
        $region29: #{tpu_custom_call.1} parent=11 // pred_check
          %p203 = pneg %p150
        $region30: #{tpu_custom_call.1} parent=11 // pred_check_branch
          %205 = sbr.rel (%p203) target = $region32
        $region31: #{tpu_custom_call.1} parent=11 // pred_region
          %207 = vsyncadd [#allocation6], 0
          %s208 = sshll.u32 %s5, 4
          %s209 = int_to_ptr.hbm [resolvable:$true] %s208
          %s210 = sshll.u32 [#allocation5], 4
          %s211 = int_to_ptr.vmem [resolvable:$true] %s210
          %216 = dma.hbm_to_vmem [thread:$0]  %s209, 256, %s211, [#allocation6], 64, 64, 4
        $region32: #{tpu_custom_call.1} parent=11 // pred_fallthru
          _
      $region12: #{tpu_custom_call.1} parent=5 // pred_fallthru
        _
      %p217 = scmp.lt.s32.totalorder %s19, 2
      // Predicated region
      $region33: #{tpu_custom_call.1} parent=5 // pred_check
        %p218 = pneg %p217
      $region34: #{tpu_custom_call.1} parent=5 // pred_check_branch
        %220 = sbr.rel (%p218) target = $region36
      $region35: #{tpu_custom_call.1} parent=5 // pred_region
        // Predicated region
        $region37: #{tpu_custom_call.1} parent=35 // pred_check
          %p221 = pneg %p39
        $region38: #{tpu_custom_call.1} parent=35 // pred_check_branch
          %223 = sbr.rel (%p221) target = $region40
        $region39: #{tpu_custom_call.1} parent=35 // pred_region
          %s224 = sand.u32 %s29, 1
          %s225 = scalar_lea.sflag [#allocation3], %s224
          %s226 = sand.u32 %s29, 1
          %s227 = smul.addr %s226, 48
          %s228 = scalar_lea.vmem [#allocation2], %s227
          %230 = vsyncadd %s225, 0
          %s231 = smul.addr %s19, 6
          %s232 = smul.addr %s231, 8
          %s233 = scalar_lea.hbm %s0, %s232
          %s235 = sshll.u32 %s233, 4
          %s236 = int_to_ptr.hbm [resolvable:$true] %s235
          %s237 = sshll.u32 %s228, 4
          %s238 = int_to_ptr.vmem [resolvable:$true] %s237
          %240 = dma.hbm_to_vmem [thread:$0]  %s236, 768, %s238, %s225
        $region40: #{tpu_custom_call.1} parent=35 // pred_fallthru
          _
      $region36: #{tpu_custom_call.1} parent=5 // pred_fallthru
        _
      %p241 = scmp.le.s32.totalorder 1, %s19
      %p242 = scmp.lt.s32.totalorder %s19, 3
      %p243 = pnand %p241, %p242
      %p244 = pneg %p243
      // Predicated region
      $region41: #{tpu_custom_call.1} parent=5 // pred_check
        _
      $region42: #{tpu_custom_call.1} parent=5 // pred_check_branch
        %246 = sbr.rel (%p243) target = $region44
      $region43: #{tpu_custom_call.1} parent=5 // pred_region
        %s247 = ssub.s32 %s19, 1
        %s248 = sand.u32 %s32, 1
        %s249 = scalar_lea.sflag [#allocation3], %s248
        %s250 = sand.u32 %s32, 1
        %s251 = smul.addr %s250, 48
        %s252 = scalar_lea.vmem [#allocation2], %s251
        // Predicated region
        $region45: #{tpu_custom_call.1} parent=43 // pred_check
          %p253 = pneg %p45
        $region46: #{tpu_custom_call.1} parent=43 // pred_check_branch
          %255 = sbr.rel (%p253) target = $region48
        $region47: #{tpu_custom_call.1} parent=43 // pred_region
          %257 = dma.done %s249, 768
        $region48: #{tpu_custom_call.1} parent=43 // pred_fallthru
          _
        // Predicated region
        $region49: #{tpu_custom_call.1} parent=43 // pred_check
          %p258 = pneg %p150
        $region50: #{tpu_custom_call.1} parent=43 // pred_check_branch
          %260 = sbr.rel (%p258) target = $region52
        $region51: #{tpu_custom_call.1} parent=43 // pred_region
          %262 = dma.done [#allocation6], 256
        $region52: #{tpu_custom_call.1} parent=43 // pred_fallthru
          _
        %s263 = sand.u32 %s32, 1
        %s264 = scalar_lea.sflag [#allocation3], %s263
        %s265 = sand.u32 %s32, 1
        %s266 = smul.addr %s265, 48
        %s267 = scalar_lea.vmem [#allocation2], %s266
        %p268 = pneg %p45
        %p269 = pneg %p42
        %p270 = pneg %p66
        %p271 = pneg %p63
        %p272 = pneg %p87
        %p273 = pneg %p84
        %p274 = pneg %p108
        %p275 = pneg %p105
        %p276 = pneg %p129
        %p277 = pneg %p126
        %p278 = pneg %p150
        %p279 = pneg %p147
        %p280 = pneg %p176
        %p281 = pneg %p173
        %s282 = sand.u32 %s163, 1
        %s283 = scalar_lea.sflag [#allocation4], %s282
        %s284 = sand.u32 %s163, 1
        %s285 = smul.addr %s284, 64
        %s286 = scalar_lea.vmem [#allocation7], %s285
        %v287 = vld [vmem:[#allocation5] sm:$0xf]
        %v288 = vld [vmem:[%s252 + $0x8] sm:$0xff]
        %v289 = vld [vmem:[%s252 + $0x10] sm:$0xff]
        %v290 = vld [vmem:[%s252 + $0x18] sm:$0xff]
        %v292 = vperm.slane %v287, 0
        %v293 = vperm.slane %v287, 2
        %v296 = vperm.slane %v292, 0
        %v297 = vperm.slane %v293, 0
        %300 = vrot.lane.b32.xlu0 %v296, 42
        %v301 = vpop.permute.xlu0 %300
        %302 = vrot.lane.b32.xlu0 %v297, 42
        %v303 = vpop.permute.xlu0 %302
        %vm304 = vcmask 343040
        %v305 = vsel %vm304, %v301, %v303
        %v309 = vmul.f32 %v288, %v301
        %v310 = vmul.f32 %v289, %v305
        %v311 = vmul.f32 %v290, %v303
        %v312 = vperm.slane %v287, 1
        %v313 = vperm.slane %v287, 3
        %v316 = vperm.slane %v312, 1
        %v317 = vperm.slane %v313, 1
        %320 = vrot.lane.b32.xlu0 %v316, 46
        %v321 = vpop.permute.xlu0 %320
        %322 = vrot.lane.b32.xlu0 %v317, 46
        %v323 = vpop.permute.xlu0 %322
        %vm324 = vcmask 375808
        %v325 = vsel %vm324, %v321, %v323
        %v329 = vmul.f32 %v288, %v321
        %v330 = vmul.f32 %v289, %v325
        %v331 = vmul.f32 %v290, %v323
        %332 = vrot.lane.b32.xlu0 %v296, 74
        %v333 = vpop.permute.xlu0 %332
        %334 = vrot.lane.b32.xlu0 %v297, 74
        %v335 = vpop.permute.xlu0 %334
        %vm336 = vcmask 605184
        %v337 = vsel %vm336, %v333, %v335
        %v341 = vmul.f32 %v288, %v333
        %v342 = vmul.f32 %v289, %v337
        %v343 = vmul.f32 %v290, %v335
        %344 = vrot.lane.b32.xlu0 %v316, 78
        %v345 = vpop.permute.xlu0 %344
        %346 = vrot.lane.b32.xlu0 %v317, 78
        %v347 = vpop.permute.xlu0 %346
        %vm348 = vcmask 637952
        %v349 = vsel %vm348, %v345, %v347
        %v353 = vmul.f32 %v288, %v345
        %v354 = vmul.f32 %v289, %v349
        %v355 = vmul.f32 %v290, %v347
        %356 = vrot.lane.b32.xlu0 %v296, 106
        %v357 = vpop.permute.xlu0 %356
        %358 = vrot.lane.b32.xlu0 %v297, 106
        %v359 = vpop.permute.xlu0 %358
        %vm360 = vcmask 867328
        %v361 = vsel %vm360, %v357, %v359
        %v365 = vmul.f32 %v288, %v357
        %v366 = vmul.f32 %v289, %v361
        %v367 = vmul.f32 %v290, %v359
        %368 = vrot.lane.b32.xlu0 %v316, 110
        %v369 = vpop.permute.xlu0 %368
        %370 = vrot.lane.b32.xlu0 %v317, 110
        %v371 = vpop.permute.xlu0 %370
        %vm372 = vcmask 900096
        %v373 = vsel %vm372, %v369, %v371
        %v377 = vmul.f32 %v288, %v369
        %v378 = vmul.f32 %v289, %v373
        %v379 = vmul.f32 %v290, %v371
        %383 = vrot.lane.b32.xlu0 %v288, 126
        %v384 = vpop.permute.xlu0 %383
        %385 = vrot.lane.b32.xlu0 %v289, 126
        %v386 = vpop.permute.xlu0 %385
        %387 = vrot.lane.b32.xlu0 %v290, 126
        %v388 = vpop.permute.xlu0 %387
        %vm389 = vcmask 1031168
        %v390 = vsel %vm389, %v384, %v386
        %v391 = vsel %vm389, %v386, %v388
        %395 = vrot.lane.b32.xlu0 %v329, 124
        %v396 = vpop.permute.xlu0 %395
        %397 = vrot.lane.b32.xlu0 %v330, 124
        %v398 = vpop.permute.xlu0 %397
        %399 = vrot.lane.b32.xlu0 %v331, 124
        %v400 = vpop.permute.xlu0 %399
        %vm401 = vcmask 1014784
        %v402 = vsel %vm401, %v396, %v398
        %v403 = vsel %vm401, %v398, %v400
        %407 = vrot.lane.b32.xlu0 %v341, 96
        %v408 = vpop.permute.xlu0 %407
        %409 = vrot.lane.b32.xlu0 %v342, 96
        %v410 = vpop.permute.xlu0 %409
        %411 = vrot.lane.b32.xlu0 %v343, 96
        %v412 = vpop.permute.xlu0 %411
        %vm413 = vcmask 785408
        %v414 = vsel %vm413, %v408, %v410
        %v415 = vsel %vm413, %v410, %v412
        %416 = vrot.lane.b32.xlu0 %v288, 94
        %v417 = vpop.permute.xlu0 %416
        %418 = vrot.lane.b32.xlu0 %v289, 94
        %v419 = vpop.permute.xlu0 %418
        %420 = vrot.lane.b32.xlu0 %v290, 94
        %v421 = vpop.permute.xlu0 %420
        %vm422 = vcmask 769024
        %v423 = vsel %vm422, %v417, %v419
        %v424 = vsel %vm422, %v419, %v421
        %428 = vrot.lane.b32.xlu0 %v353, 92
        %v429 = vpop.permute.xlu0 %428
        %430 = vrot.lane.b32.xlu0 %v354, 92
        %v431 = vpop.permute.xlu0 %430
        %432 = vrot.lane.b32.xlu0 %v355, 92
        %v433 = vpop.permute.xlu0 %432
        %vm434 = vcmask 752640
        %v435 = vsel %vm434, %v429, %v431
        %v436 = vsel %vm434, %v431, %v433
        %440 = vrot.lane.b32.xlu0 %v365, 64
        %v441 = vpop.permute.xlu0 %440
        %442 = vrot.lane.b32.xlu0 %v366, 64
        %v443 = vpop.permute.xlu0 %442
        %444 = vrot.lane.b32.xlu0 %v367, 64
        %v445 = vpop.permute.xlu0 %444
        %vm446 = vcmask 523264
        %v447 = vsel %vm446, %v441, %v443
        %v448 = vsel %vm446, %v443, %v445
        %449 = vrot.lane.b32.xlu0 %v288, 62
        %v450 = vpop.permute.xlu0 %449
        %451 = vrot.lane.b32.xlu0 %v289, 62
        %v452 = vpop.permute.xlu0 %451
        %453 = vrot.lane.b32.xlu0 %v290, 62
        %v454 = vpop.permute.xlu0 %453
        %vm455 = vcmask 506880
        %v456 = vsel %vm455, %v450, %v452
        %v457 = vsel %vm455, %v452, %v454
        %461 = vrot.lane.b32.xlu0 %v377, 60
        %v462 = vpop.permute.xlu0 %461
        %463 = vrot.lane.b32.xlu0 %v378, 60
        %v464 = vpop.permute.xlu0 %463
        %465 = vrot.lane.b32.xlu0 %v379, 60
        %v466 = vpop.permute.xlu0 %465
        %vm467 = vcmask 490496
        %v468 = vsel %vm467, %v462, %v464
        %v469 = vsel %vm467, %v464, %v466
        %v470 = vld [vmem:[%s1] sm:$0xff]
        %v471 = vld [vmem:[%s1 + $0x8] sm:$0xff]
        %v472 = vld [vmem:[%s1 + $0x10] sm:$0xff]
        %v473 = vld [vmem:[%s1 + $0x18] sm:$0xff]
        %v474 = vld [vmem:[%s3] sm:$0xff]
        %v475 = vld [vmem:[%s3 + $0x8] sm:$0xff]
        %v476 = vld [vmem:[%s3 + $0x10] sm:$0xff]
        %v477 = vld [vmem:[%s3 + $0x18] sm:$0xff]
        %479 = vset.pattern.permute.xlu0 0
        %480 = vperm.xlu0 %479, %v474
        %v481 = vpop.permute.xlu0 %480
        %484 = vset.pattern.permute.xlu0 0
        %485 = vperm.xlu0 %484, %v475
        %v486 = vpop.permute.xlu0 %485
        %489 = vset.pattern.permute.xlu0 0
        %490 = vperm.xlu0 %489, %v476
        %v491 = vpop.permute.xlu0 %490
        %494 = vset.pattern.permute.xlu0 0
        %495 = vperm.xlu0 %494, %v477
        %v496 = vpop.permute.xlu0 %495
        %501 = vrot.lane.b32.xlu0 %v309, 86
        %v502 = vpop.permute.xlu0 %501
        %503 = vrot.lane.b32.xlu0 %v310, 86
        %v504 = vpop.permute.xlu0 %503
        %505 = vrot.lane.b32.xlu0 %v311, 86
        %v506 = vpop.permute.xlu0 %505
        %507 = vrot.lane.b32.xlu0 %v390, 86
        %v508 = vpop.permute.xlu0 %507
        %509 = vrot.lane.b32.xlu0 %v391, 86
        %v510 = vpop.permute.xlu0 %509
        %511 = vrot.lane.b32.xlu0 %v388, 86
        %v512 = vpop.permute.xlu0 %511
        %513 = vrot.lane.b32.xlu0 %v402, 86
        %v514 = vpop.permute.xlu0 %513
        %515 = vrot.lane.b32.xlu0 %v403, 86
        %v516 = vpop.permute.xlu0 %515
        %517 = vrot.lane.b32.xlu0 %v400, 86
        %v518 = vpop.permute.xlu0 %517
        %519 = vrot.lane.b32.xlu0 %v414, 86
        %v520 = vpop.permute.xlu0 %519
        %521 = vrot.lane.b32.xlu0 %v415, 86
        %v522 = vpop.permute.xlu0 %521
        %523 = vrot.lane.b32.xlu0 %v412, 86
        %v524 = vpop.permute.xlu0 %523
        %525 = vrot.lane.b32.xlu0 %v423, 86
        %v526 = vpop.permute.xlu0 %525
        %527 = vrot.lane.b32.xlu0 %v424, 86
        %v528 = vpop.permute.xlu0 %527
        %529 = vrot.lane.b32.xlu0 %v421, 86
        %v530 = vpop.permute.xlu0 %529
        %531 = vrot.lane.b32.xlu0 %v435, 86
        %v532 = vpop.permute.xlu0 %531
        %533 = vrot.lane.b32.xlu0 %v436, 86
        %v534 = vpop.permute.xlu0 %533
        %535 = vrot.lane.b32.xlu0 %v433, 86
        %v536 = vpop.permute.xlu0 %535
        %537 = vrot.lane.b32.xlu0 %v447, 86
        %v538 = vpop.permute.xlu0 %537
        %539 = vrot.lane.b32.xlu0 %v448, 86
        %v540 = vpop.permute.xlu0 %539
        %541 = vrot.lane.b32.xlu0 %v445, 86
        %v542 = vpop.permute.xlu0 %541
        %543 = vrot.lane.b32.xlu0 %v456, 86
        %v544 = vpop.permute.xlu0 %543
        %545 = vrot.lane.b32.xlu0 %v457, 86
        %v546 = vpop.permute.xlu0 %545
        %547 = vrot.lane.b32.xlu0 %v454, 86
        %v548 = vpop.permute.xlu0 %547
        %549 = vrot.lane.b32.xlu0 %v468, 86
        %v550 = vpop.permute.xlu0 %549
        %551 = vrot.lane.b32.xlu0 %v469, 86
        %v552 = vpop.permute.xlu0 %551
        %553 = vrot.lane.b32.xlu0 %v466, 86
        %v554 = vpop.permute.xlu0 %553
        %vm555 = vcmask 703488
        %v556 = vsel %vm555, %v502, %v504
        %v557 = vsel %vm555, %v504, %v506
        %v558 = vsel %vm555, %v508, %v510
        %v559 = vsel %vm555, %v510, %v512
        %v560 = vsel %vm555, %v514, %v516
        %v561 = vsel %vm555, %v516, %v518
        %v562 = vsel %vm555, %v520, %v522
        %v563 = vsel %vm555, %v522, %v524
        %v564 = vsel %vm555, %v526, %v528
        %v565 = vsel %vm555, %v528, %v530
        %v566 = vsel %vm555, %v532, %v534
        %v567 = vsel %vm555, %v534, %v536
        %v568 = vsel %vm555, %v538, %v540
        %v569 = vsel %vm555, %v540, %v542
        %v570 = vsel %vm555, %v544, %v546
        %v571 = vsel %vm555, %v546, %v548
        %v572 = vsel %vm555, %v550, %v552
        %v573 = vsel %vm555, %v552, %v554
        %vm592 = vcmask 588800
        %v594 = vsel %vm592, %v470, 0
        %v597 = vsel %vm592, %v471, 0
        %v600 = vsel %vm592, %v472, 0
        %v603 = vsel %vm592, %v473, 0
        %605 = vmatpush.msra.mxu0 0.0
        %606 = vmatpush.msra.mxu0 0.0
        %607 = vmatpush.msra.mxu0 0.0
        %608 = vmatpush.msra.mxu0 0.0
        %609 = vmatpush.msra.mxu0 0.0
        %610 = vmatpush.msra.mxu0 0.0
        %611 = vmatpush.msra.mxu0 0.0
        %612 = vmatpush.msra.mxu0 %v572
        %613 = vmatpush.msra.mxu0 %v570
        %614 = vmatpush.msra.mxu0 %v568
        %615 = vmatpush.msra.mxu0 %v566
        %616 = vmatpush.msra.mxu0 %v564
        %617 = vmatpush.msra.mxu0 %v562
        %618 = vmatpush.msra.mxu0 %v560
        %619 = vmatpush.msra.mxu0 %v558
        %620 = vmatpush.msra.mxu0 %v556
        %621 = vmatmul.f32.gmra.mxu0 %v594
        %v622 = vpop.f32.mrf.mxu0
        %v623 = vadd.f32 %v481, %v622
        %624 = vmatmul.f32.gmra.mxu0 %v597
        %v625 = vpop.f32.mrf.mxu0
        %v626 = vadd.f32 %v486, %v625
        %627 = vmatmul.f32.gmra.mxu0 %v600
        %v628 = vpop.f32.mrf.mxu0
        %v629 = vadd.f32 %v491, %v628
        %630 = vmatmul.f32.gmra.mxu0 %v603
        %v631 = vpop.f32.mrf.mxu0
        %v632 = vadd.f32 %v496, %v631
        %633 = vdwg.mxu0
        %634 = vmatpush.msra.mxu0 0.0
        %635 = vmatpush.msra.mxu0 0.0
        %636 = vmatpush.msra.mxu0 0.0
        %637 = vmatpush.msra.mxu0 0.0
        %638 = vmatpush.msra.mxu0 0.0
        %639 = vmatpush.msra.mxu0 0.0
        %640 = vmatpush.msra.mxu0 0.0
        %641 = vmatpush.msra.mxu0 %v573
        %642 = vmatpush.msra.mxu0 %v571
        %643 = vmatpush.msra.mxu0 %v569
        %644 = vmatpush.msra.mxu0 %v567
        %645 = vmatpush.msra.mxu0 %v565
        %646 = vmatpush.msra.mxu0 %v563
        %647 = vmatpush.msra.mxu0 %v561
        %648 = vmatpush.msra.mxu0 %v559
        %649 = vmatpush.msra.mxu0 %v557
        %650 = vmatmul.f32.gmra.mxu0 %v594
        %v651 = vpop.f32.mrf.mxu0
        %v652 = vadd.f32 %v481, %v651
        %653 = vmatmul.f32.gmra.mxu0 %v597
        %v654 = vpop.f32.mrf.mxu0
        %v655 = vadd.f32 %v486, %v654
        %656 = vmatmul.f32.gmra.mxu0 %v600
        %v657 = vpop.f32.mrf.mxu0
        %v658 = vadd.f32 %v491, %v657
        %659 = vmatmul.f32.gmra.mxu0 %v603
        %v660 = vpop.f32.mrf.mxu0
        %v661 = vadd.f32 %v496, %v660
        %662 = vdwg.mxu0
        %v663 = vmax.f32 %v623, 0.0
        %v664 = vmax.f32 %v652, 0.0
        %v665 = vmax.f32 %v626, 0.0
        %v666 = vmax.f32 %v655, 0.0
        %v667 = vmax.f32 %v629, 0.0
        %v668 = vmax.f32 %v658, 0.0
        %v669 = vmax.f32 %v632, 0.0
        %v670 = vmax.f32 %v661, 0.0
        %v671 = vld [vmem:[%s2] sm:$0xff]
        %v672 = vld [vmem:[%s4] sm:$0xff]
        %674 = vset.pattern.permute.xlu0 0
        %675 = vperm.xlu0 %674, %v672
        %v676 = vpop.permute.xlu0 %675
        %vm678 = vcmask 261120
        %v680 = vsel %vm678, %v671, 0
        %682 = vmatpush.msra.mxu0 0.0
        %683 = vmatpush.msra.mxu0 0.0
        %684 = vmatpush.msra.mxu0 0.0
        %685 = vmatpush.msra.mxu0 0.0
        %686 = vmatpush.msra.mxu0 0.0
        %687 = vmatpush.msra.mxu0 0.0
        %688 = vmatpush.msra.mxu0 0.0
        %689 = vmatpush.msra.mxu0 0.0
        %690 = vmatpush.msra.mxu0 0.0
        %691 = vmatpush.msra.mxu0 0.0
        %692 = vmatpush.msra.mxu0 0.0
        %693 = vmatpush.msra.mxu0 0.0
        %694 = vmatpush.msra.mxu0 %v669
        %695 = vmatpush.msra.mxu0 %v667
        %696 = vmatpush.msra.mxu0 %v665
        %697 = vmatpush.msra.mxu0 %v663
        %698 = vmatmul.f32.gmra.mxu0 %v680
        %v699 = vpop.f32.mrf.mxu0
        %v700 = vadd.f32 %v676, %v699
        %701 = vdwg.mxu0
        %702 = vmatpush.msra.mxu0 0.0
        %703 = vmatpush.msra.mxu0 0.0
        %704 = vmatpush.msra.mxu0 0.0
        %705 = vmatpush.msra.mxu0 0.0
        %706 = vmatpush.msra.mxu0 0.0
        %707 = vmatpush.msra.mxu0 0.0
        %708 = vmatpush.msra.mxu0 0.0
        %709 = vmatpush.msra.mxu0 0.0
        %710 = vmatpush.msra.mxu0 0.0
        %711 = vmatpush.msra.mxu0 0.0
        %712 = vmatpush.msra.mxu0 0.0
        %713 = vmatpush.msra.mxu0 0.0
        %714 = vmatpush.msra.mxu0 %v670
        %715 = vmatpush.msra.mxu0 %v668
        %716 = vmatpush.msra.mxu0 %v666
        %717 = vmatpush.msra.mxu0 %v664
        %718 = vmatmul.f32.gmra.mxu0 %v680
        %v719 = vpop.f32.mrf.mxu0
        %v720 = vadd.f32 %v676, %v719
        %721 = vdwg.mxu0
        %v722 = vmax.f32 %v700, 0.0
        %v723 = vmax.f32 %v720, 0.0
        %724 = vst [vmem:[%s286] sm:$0xff] %v722
        %725 = vst [vmem:[%s286 + $0x8] sm:$0xff] %v723
        %s726 = scalar_lea.vmem [#allocation5], 4
        %v727 = vld [vmem:[%s726] sm:$0xf]
        %v728 = vld [vmem:[%s252 + $0x8] sm:$0xff]
        %v729 = vld [vmem:[%s252 + $0x10] sm:$0xff]
        %v730 = vld [vmem:[%s252 + $0x18] sm:$0xff]
        %v732 = vperm.slane %v727, 0
        %v733 = vperm.slane %v727, 2
        %v736 = vperm.slane %v732, 0
        %v737 = vperm.slane %v733, 0
        %740 = vrot.lane.b32.xlu0 %v736, 8
        %v741 = vpop.permute.xlu0 %740
        %742 = vrot.lane.b32.xlu0 %v737, 8
        %v743 = vpop.permute.xlu0 %742
        %vm744 = vcmask 64512
        %v745 = vsel %vm744, %v741, %v743
        %v749 = vmul.f32 %v728, %v741
        %v750 = vmul.f32 %v729, %v745
        %v751 = vmul.f32 %v730, %v743
        %v752 = vperm.slane %v727, 1
        %v753 = vperm.slane %v727, 3
        %v756 = vperm.slane %v752, 1
        %v757 = vperm.slane %v753, 1
        %760 = vrot.lane.b32.xlu0 %v756, 16
        %v761 = vpop.permute.xlu0 %760
        %762 = vrot.lane.b32.xlu0 %v757, 16
        %v763 = vpop.permute.xlu0 %762
        %vm764 = vcmask 130048
        %v765 = vsel %vm764, %v761, %v763
        %v769 = vmul.f32 %v728, %v761
        %v770 = vmul.f32 %v729, %v765
        %v771 = vmul.f32 %v730, %v763
        %772 = vrot.lane.b32.xlu0 %v736, 72
        %v773 = vpop.permute.xlu0 %772
        %774 = vrot.lane.b32.xlu0 %v737, 72
        %v775 = vpop.permute.xlu0 %774
        %v776 = vsel %vm592, %v773, %v775
        %v780 = vmul.f32 %v728, %v773
        %v781 = vmul.f32 %v729, %v776
        %v782 = vmul.f32 %v730, %v775
        %783 = vrot.lane.b32.xlu0 %v756, 80
        %v784 = vpop.permute.xlu0 %783
        %785 = vrot.lane.b32.xlu0 %v757, 80
        %v786 = vpop.permute.xlu0 %785
        %vm787 = vcmask 654336
        %v788 = vsel %vm787, %v784, %v786
        %v792 = vmul.f32 %v728, %v784
        %v793 = vmul.f32 %v729, %v788
        %v794 = vmul.f32 %v730, %v786
        %v795 = vld [vmem:[%s252 + $0x20] sm:$0xff]
        %v796 = vmul.f32 %v729, %v741
        %v797 = vmul.f32 %v730, %v745
        %v798 = vmul.f32 %v795, %v743
        %v799 = vmul.f32 %v729, %v761
        %v800 = vmul.f32 %v730, %v765
        %v801 = vmul.f32 %v795, %v763
        %805 = vrot.lane.b32.xlu0 %v728, 124
        %v806 = vpop.permute.xlu0 %805
        %807 = vrot.lane.b32.xlu0 %v729, 124
        %v808 = vpop.permute.xlu0 %807
        %809 = vrot.lane.b32.xlu0 %v730, 124
        %v810 = vpop.permute.xlu0 %809
        %v811 = vsel %vm401, %v806, %v808
        %v812 = vsel %vm401, %v808, %v810
        %816 = vrot.lane.b32.xlu0 %v769, 120
        %v817 = vpop.permute.xlu0 %816
        %818 = vrot.lane.b32.xlu0 %v770, 120
        %v819 = vpop.permute.xlu0 %818
        %820 = vrot.lane.b32.xlu0 %v771, 120
        %v821 = vpop.permute.xlu0 %820
        %vm822 = vcmask 982016
        %v823 = vsel %vm822, %v817, %v819
        %v824 = vsel %vm822, %v819, %v821
        %828 = vrot.lane.b32.xlu0 %v780, 64
        %v829 = vpop.permute.xlu0 %828
        %830 = vrot.lane.b32.xlu0 %v781, 64
        %v831 = vpop.permute.xlu0 %830
        %832 = vrot.lane.b32.xlu0 %v782, 64
        %v833 = vpop.permute.xlu0 %832
        %v834 = vsel %vm446, %v829, %v831
        %v835 = vsel %vm446, %v831, %v833
        %836 = vrot.lane.b32.xlu0 %v728, 60
        %v837 = vpop.permute.xlu0 %836
        %838 = vrot.lane.b32.xlu0 %v729, 60
        %v839 = vpop.permute.xlu0 %838
        %840 = vrot.lane.b32.xlu0 %v730, 60
        %v841 = vpop.permute.xlu0 %840
        %v842 = vsel %vm467, %v837, %v839
        %v843 = vsel %vm467, %v839, %v841
        %847 = vrot.lane.b32.xlu0 %v792, 56
        %v848 = vpop.permute.xlu0 %847
        %849 = vrot.lane.b32.xlu0 %v793, 56
        %v850 = vpop.permute.xlu0 %849
        %851 = vrot.lane.b32.xlu0 %v794, 56
        %v852 = vpop.permute.xlu0 %851
        %vm853 = vcmask 457728
        %v854 = vsel %vm853, %v848, %v850
        %v855 = vsel %vm853, %v850, %v852
        %857 = vrot.lane.b32.xlu0 %v795, 124
        %v858 = vpop.permute.xlu0 %857
        %v859 = vsel %vm401, %v810, %v858
        %863 = vrot.lane.b32.xlu0 %v799, 120
        %v864 = vpop.permute.xlu0 %863
        %865 = vrot.lane.b32.xlu0 %v800, 120
        %v866 = vpop.permute.xlu0 %865
        %867 = vrot.lane.b32.xlu0 %v801, 120
        %v868 = vpop.permute.xlu0 %867
        %v869 = vsel %vm822, %v864, %v866
        %v870 = vsel %vm822, %v866, %v868
        %s871 = scalar_lea.vmem %s1, 32
        %v872 = vld [vmem:[%s871] sm:$0xff]
        %v873 = vld [vmem:[%s871 + $0x8] sm:$0xff]
        %v874 = vld [vmem:[%s871 + $0x10] sm:$0xff]
        %v875 = vld [vmem:[%s871 + $0x18] sm:$0xff]
        %s876 = scalar_lea.vmem %s3, 32
        %v877 = vld [vmem:[%s876] sm:$0xff]
        %v878 = vld [vmem:[%s876 + $0x8] sm:$0xff]
        %v879 = vld [vmem:[%s876 + $0x10] sm:$0xff]
        %v880 = vld [vmem:[%s876 + $0x18] sm:$0xff]
        %882 = vset.pattern.permute.xlu0 0
        %883 = vperm.xlu0 %882, %v877
        %v884 = vpop.permute.xlu0 %883
        %887 = vset.pattern.permute.xlu0 0
        %888 = vperm.xlu0 %887, %v878
        %v889 = vpop.permute.xlu0 %888
        %892 = vset.pattern.permute.xlu0 0
        %893 = vperm.xlu0 %892, %v879
        %v894 = vpop.permute.xlu0 %893
        %897 = vset.pattern.permute.xlu0 0
        %898 = vperm.xlu0 %897, %v880
        %v899 = vpop.permute.xlu0 %898
        %907 = vrot.lane.b32.xlu0 %v749, 120
        %v908 = vpop.permute.xlu0 %907
        %909 = vrot.lane.b32.xlu0 %v750, 120
        %v910 = vpop.permute.xlu0 %909
        %911 = vrot.lane.b32.xlu0 %v751, 120
        %v912 = vpop.permute.xlu0 %911
        %913 = vrot.lane.b32.xlu0 %v811, 120
        %v914 = vpop.permute.xlu0 %913
        %915 = vrot.lane.b32.xlu0 %v812, 120
        %v916 = vpop.permute.xlu0 %915
        %917 = vrot.lane.b32.xlu0 %v810, 120
        %v918 = vpop.permute.xlu0 %917
        %919 = vrot.lane.b32.xlu0 %v823, 120
        %v920 = vpop.permute.xlu0 %919
        %921 = vrot.lane.b32.xlu0 %v824, 120
        %v922 = vpop.permute.xlu0 %921
        %923 = vrot.lane.b32.xlu0 %v821, 120
        %v924 = vpop.permute.xlu0 %923
        %925 = vrot.lane.b32.xlu0 %v834, 120
        %v926 = vpop.permute.xlu0 %925
        %927 = vrot.lane.b32.xlu0 %v835, 120
        %v928 = vpop.permute.xlu0 %927
        %929 = vrot.lane.b32.xlu0 %v833, 120
        %v930 = vpop.permute.xlu0 %929
        %931 = vrot.lane.b32.xlu0 %v842, 120
        %v932 = vpop.permute.xlu0 %931
        %933 = vrot.lane.b32.xlu0 %v843, 120
        %v934 = vpop.permute.xlu0 %933
        %935 = vrot.lane.b32.xlu0 %v841, 120
        %v936 = vpop.permute.xlu0 %935
        %937 = vrot.lane.b32.xlu0 %v854, 120
        %v938 = vpop.permute.xlu0 %937
        %939 = vrot.lane.b32.xlu0 %v855, 120
        %v940 = vpop.permute.xlu0 %939
        %941 = vrot.lane.b32.xlu0 %v852, 120
        %v942 = vpop.permute.xlu0 %941
        %943 = vrot.lane.b32.xlu0 %v796, 120
        %v944 = vpop.permute.xlu0 %943
        %945 = vrot.lane.b32.xlu0 %v797, 120
        %v946 = vpop.permute.xlu0 %945
        %947 = vrot.lane.b32.xlu0 %v798, 120
        %v948 = vpop.permute.xlu0 %947
        %949 = vrot.lane.b32.xlu0 %v859, 120
        %v950 = vpop.permute.xlu0 %949
        %951 = vrot.lane.b32.xlu0 %v858, 120
        %v952 = vpop.permute.xlu0 %951
        %953 = vrot.lane.b32.xlu0 %v869, 120
        %v954 = vpop.permute.xlu0 %953
        %955 = vrot.lane.b32.xlu0 %v870, 120
        %v956 = vpop.permute.xlu0 %955
        %957 = vrot.lane.b32.xlu0 %v868, 120
        %v958 = vpop.permute.xlu0 %957
        %v959 = vsel %vm822, %v908, %v910
        %v960 = vsel %vm822, %v910, %v912
        %v961 = vsel %vm822, %v914, %v916
        %v962 = vsel %vm822, %v916, %v918
        %v963 = vsel %vm822, %v920, %v922
        %v964 = vsel %vm822, %v922, %v924
        %v965 = vsel %vm822, %v926, %v928
        %v966 = vsel %vm822, %v928, %v930
        %v967 = vsel %vm822, %v932, %v934
        %v968 = vsel %vm822, %v934, %v936
        %v969 = vsel %vm822, %v938, %v940
        %v970 = vsel %vm822, %v940, %v942
        %v971 = vsel %vm822, %v944, %v946
        %v972 = vsel %vm822, %v946, %v948
        %v973 = vsel %vm822, %v916, %v950
        %v974 = vsel %vm822, %v950, %v952
        %v975 = vsel %vm822, %v954, %v956
        %v976 = vsel %vm822, %v956, %v958
        %v996 = vsel %vm592, %v872, 0
        %v999 = vsel %vm592, %v873, 0
        %v1002 = vsel %vm592, %v874, 0
        %v1005 = vsel %vm592, %v875, 0
        %1007 = vmatpush.msra.mxu0 0.0
        %1008 = vmatpush.msra.mxu0 0.0
        %1009 = vmatpush.msra.mxu0 0.0
        %1010 = vmatpush.msra.mxu0 0.0
        %1011 = vmatpush.msra.mxu0 0.0
        %1012 = vmatpush.msra.mxu0 0.0
        %1013 = vmatpush.msra.mxu0 0.0
        %1014 = vmatpush.msra.mxu0 %v975
        %1015 = vmatpush.msra.mxu0 %v973
        %1016 = vmatpush.msra.mxu0 %v971
        %1017 = vmatpush.msra.mxu0 %v969
        %1018 = vmatpush.msra.mxu0 %v967
        %1019 = vmatpush.msra.mxu0 %v965
        %1020 = vmatpush.msra.mxu0 %v963
        %1021 = vmatpush.msra.mxu0 %v961
        %1022 = vmatpush.msra.mxu0 %v959
        %1023 = vmatmul.f32.gmra.mxu0 %v996
        %v1024 = vpop.f32.mrf.mxu0
        %v1025 = vadd.f32 %v884, %v1024
        %1026 = vmatmul.f32.gmra.mxu0 %v999
        %v1027 = vpop.f32.mrf.mxu0
        %v1028 = vadd.f32 %v889, %v1027
        %1029 = vmatmul.f32.gmra.mxu0 %v1002
        %v1030 = vpop.f32.mrf.mxu0
        %v1031 = vadd.f32 %v894, %v1030
        %1032 = vmatmul.f32.gmra.mxu0 %v1005
        %v1033 = vpop.f32.mrf.mxu0
        %v1034 = vadd.f32 %v899, %v1033
        %1035 = vdwg.mxu0
        %1036 = vmatpush.msra.mxu0 0.0
        %1037 = vmatpush.msra.mxu0 0.0
        %1038 = vmatpush.msra.mxu0 0.0
        %1039 = vmatpush.msra.mxu0 0.0
        %1040 = vmatpush.msra.mxu0 0.0
        %1041 = vmatpush.msra.mxu0 0.0
        %1042 = vmatpush.msra.mxu0 0.0
        %1043 = vmatpush.msra.mxu0 %v976
        %1044 = vmatpush.msra.mxu0 %v974
        %1045 = vmatpush.msra.mxu0 %v972
        %1046 = vmatpush.msra.mxu0 %v970
        %1047 = vmatpush.msra.mxu0 %v968
        %1048 = vmatpush.msra.mxu0 %v966
        %1049 = vmatpush.msra.mxu0 %v964
        %1050 = vmatpush.msra.mxu0 %v962
        %1051 = vmatpush.msra.mxu0 %v960
        %1052 = vmatmul.f32.gmra.mxu0 %v996
        %v1053 = vpop.f32.mrf.mxu0
        %v1054 = vadd.f32 %v884, %v1053
        %1055 = vmatmul.f32.gmra.mxu0 %v999
        %v1056 = vpop.f32.mrf.mxu0
        %v1057 = vadd.f32 %v889, %v1056
        %1058 = vmatmul.f32.gmra.mxu0 %v1002
        %v1059 = vpop.f32.mrf.mxu0
        %v1060 = vadd.f32 %v894, %v1059
        %1061 = vmatmul.f32.gmra.mxu0 %v1005
        %v1062 = vpop.f32.mrf.mxu0
        %v1063 = vadd.f32 %v899, %v1062
        %1064 = vdwg.mxu0
        %v1065 = vmax.f32 %v1025, 0.0
        %v1066 = vmax.f32 %v1054, 0.0
        %v1067 = vmax.f32 %v1028, 0.0
        %v1068 = vmax.f32 %v1057, 0.0
        %v1069 = vmax.f32 %v1031, 0.0
        %v1070 = vmax.f32 %v1060, 0.0
        %v1071 = vmax.f32 %v1034, 0.0
        %v1072 = vmax.f32 %v1063, 0.0
        %s1073 = scalar_lea.vmem %s2, 8
        %v1074 = vld [vmem:[%s1073] sm:$0xff]
        %s1075 = scalar_lea.vmem %s4, 8
        %v1076 = vld [vmem:[%s1075] sm:$0xff]
        %1078 = vset.pattern.permute.xlu0 0
        %1079 = vperm.xlu0 %1078, %v1076
        %v1080 = vpop.permute.xlu0 %1079
        %v1083 = vsel %vm678, %v1074, 0
        %1085 = vmatpush.msra.mxu0 0.0
        %1086 = vmatpush.msra.mxu0 0.0
        %1087 = vmatpush.msra.mxu0 0.0
        %1088 = vmatpush.msra.mxu0 0.0
        %1089 = vmatpush.msra.mxu0 0.0
        %1090 = vmatpush.msra.mxu0 0.0
        %1091 = vmatpush.msra.mxu0 0.0
        %1092 = vmatpush.msra.mxu0 0.0
        %1093 = vmatpush.msra.mxu0 0.0
        %1094 = vmatpush.msra.mxu0 0.0
        %1095 = vmatpush.msra.mxu0 0.0
        %1096 = vmatpush.msra.mxu0 0.0
        %1097 = vmatpush.msra.mxu0 %v1071
        %1098 = vmatpush.msra.mxu0 %v1069
        %1099 = vmatpush.msra.mxu0 %v1067
        %1100 = vmatpush.msra.mxu0 %v1065
        %1101 = vmatmul.f32.gmra.mxu0 %v1083
        %v1102 = vpop.f32.mrf.mxu0
        %v1103 = vadd.f32 %v1080, %v1102
        %1104 = vdwg.mxu0
        %1105 = vmatpush.msra.mxu0 0.0
        %1106 = vmatpush.msra.mxu0 0.0
        %1107 = vmatpush.msra.mxu0 0.0
        %1108 = vmatpush.msra.mxu0 0.0
        %1109 = vmatpush.msra.mxu0 0.0
        %1110 = vmatpush.msra.mxu0 0.0
        %1111 = vmatpush.msra.mxu0 0.0
        %1112 = vmatpush.msra.mxu0 0.0
        %1113 = vmatpush.msra.mxu0 0.0
        %1114 = vmatpush.msra.mxu0 0.0
        %1115 = vmatpush.msra.mxu0 0.0
        %1116 = vmatpush.msra.mxu0 0.0
        %1117 = vmatpush.msra.mxu0 %v1072
        %1118 = vmatpush.msra.mxu0 %v1070
        %1119 = vmatpush.msra.mxu0 %v1068
        %1120 = vmatpush.msra.mxu0 %v1066
        %1121 = vmatmul.f32.gmra.mxu0 %v1083
        %v1122 = vpop.f32.mrf.mxu0
        %v1123 = vadd.f32 %v1080, %v1122
        %1124 = vdwg.mxu0
        %v1125 = vmax.f32 %v1103, 0.0
        %v1126 = vmax.f32 %v1123, 0.0
        %s1127 = scalar_lea.vmem %s286, 16 [#allocation7]
        %1128 = vst [vmem:[%s1127] sm:$0xff] %v1125
        %1129 = vst [vmem:[%s1127 + $0x8] sm:$0xff] %v1126
        %s1130 = scalar_lea.vmem [#allocation5], 8
        %v1131 = vld [vmem:[%s1130] sm:$0xf]
        %v1132 = vld [vmem:[%s252] sm:$0xff]
        %v1133 = vld [vmem:[%s252 + $0x8] sm:$0xff]
        %v1134 = vld [vmem:[%s252 + $0x10] sm:$0xff]
        %v1136 = vperm.slane %v1131, 0
        %v1137 = vperm.slane %v1131, 2
        %v1140 = vperm.slane %v1136, 0
        %v1141 = vperm.slane %v1137, 0
        %1144 = vrot.lane.b32.xlu0 %v1140, 68
        %v1145 = vpop.permute.xlu0 %1144
        %1146 = vrot.lane.b32.xlu0 %v1141, 68
        %v1147 = vpop.permute.xlu0 %1146
        %vm1148 = vcmask 556032
        %v1149 = vsel %vm1148, %v1145, %v1147
        %v1153 = vmul.f32 %v1132, %v1145
        %v1154 = vmul.f32 %v1133, %v1149
        %v1155 = vmul.f32 %v1134, %v1147
        %v1156 = vperm.slane %v1131, 1
        %v1157 = vperm.slane %v1131, 3
        %v1160 = vperm.slane %v1156, 1
        %v1161 = vperm.slane %v1157, 1
        %1164 = vrot.lane.b32.xlu0 %v1160, 84
        %v1165 = vpop.permute.xlu0 %1164
        %1166 = vrot.lane.b32.xlu0 %v1161, 84
        %v1167 = vpop.permute.xlu0 %1166
        %vm1168 = vcmask 687104
        %v1169 = vsel %vm1168, %v1165, %v1167
        %v1173 = vmul.f32 %v1132, %v1165
        %v1174 = vmul.f32 %v1133, %v1169
        %v1175 = vmul.f32 %v1134, %v1167
        %v1176 = vld [vmem:[%s252 + $0x18] sm:$0xff]
        %v1177 = vmul.f32 %v1133, %v1145
        %v1178 = vmul.f32 %v1134, %v1149
        %v1179 = vmul.f32 %v1176, %v1147
        %v1180 = vmul.f32 %v1133, %v1165
        %v1181 = vmul.f32 %v1134, %v1169
        %v1182 = vmul.f32 %v1176, %v1167
        %v1183 = vld [vmem:[%s252 + $0x20] sm:$0xff]
        %v1184 = vmul.f32 %v1134, %v1145
        %v1185 = vmul.f32 %v1176, %v1149
        %v1186 = vmul.f32 %v1183, %v1147
        %v1187 = vmul.f32 %v1134, %v1165
        %v1188 = vmul.f32 %v1176, %v1169
        %v1189 = vmul.f32 %v1183, %v1167
        %1193 = vrot.lane.b32.xlu0 %v1132, 120
        %v1194 = vpop.permute.xlu0 %1193
        %1195 = vrot.lane.b32.xlu0 %v1133, 120
        %v1196 = vpop.permute.xlu0 %1195
        %1197 = vrot.lane.b32.xlu0 %v1134, 120
        %v1198 = vpop.permute.xlu0 %1197
        %v1199 = vsel %vm822, %v1194, %v1196
        %v1200 = vsel %vm822, %v1196, %v1198
        %1204 = vrot.lane.b32.xlu0 %v1173, 112
        %v1205 = vpop.permute.xlu0 %1204
        %1206 = vrot.lane.b32.xlu0 %v1174, 112
        %v1207 = vpop.permute.xlu0 %1206
        %1208 = vrot.lane.b32.xlu0 %v1175, 112
        %v1209 = vpop.permute.xlu0 %1208
        %vm1210 = vcmask 916480
        %v1211 = vsel %vm1210, %v1205, %v1207
        %v1212 = vsel %vm1210, %v1207, %v1209
        %1214 = vrot.lane.b32.xlu0 %v1176, 120
        %v1215 = vpop.permute.xlu0 %1214
        %v1216 = vsel %vm822, %v1198, %v1215
        %1220 = vrot.lane.b32.xlu0 %v1180, 112
        %v1221 = vpop.permute.xlu0 %1220
        %1222 = vrot.lane.b32.xlu0 %v1181, 112
        %v1223 = vpop.permute.xlu0 %1222
        %1224 = vrot.lane.b32.xlu0 %v1182, 112
        %v1225 = vpop.permute.xlu0 %1224
        %v1226 = vsel %vm1210, %v1221, %v1223
        %v1227 = vsel %vm1210, %v1223, %v1225
        %1229 = vrot.lane.b32.xlu0 %v1183, 120
        %v1230 = vpop.permute.xlu0 %1229
        %v1231 = vsel %vm822, %v1215, %v1230
        %1235 = vrot.lane.b32.xlu0 %v1187, 112
        %v1236 = vpop.permute.xlu0 %1235
        %1237 = vrot.lane.b32.xlu0 %v1188, 112
        %v1238 = vpop.permute.xlu0 %1237
        %1239 = vrot.lane.b32.xlu0 %v1189, 112
        %v1240 = vpop.permute.xlu0 %1239
        %v1241 = vsel %vm1210, %v1236, %v1238
        %v1242 = vsel %vm1210, %v1238, %v1240
        %s1243 = scalar_lea.vmem %s1, 64
        %v1244 = vld [vmem:[%s1243] sm:$0xff]
        %v1245 = vld [vmem:[%s1243 + $0x8] sm:$0xff]
        %v1246 = vld [vmem:[%s1243 + $0x10] sm:$0xff]
        %v1247 = vld [vmem:[%s1243 + $0x18] sm:$0xff]
        %s1248 = scalar_lea.vmem %s3, 64
        %v1249 = vld [vmem:[%s1248] sm:$0xff]
        %v1250 = vld [vmem:[%s1248 + $0x8] sm:$0xff]
        %v1251 = vld [vmem:[%s1248 + $0x10] sm:$0xff]
        %v1252 = vld [vmem:[%s1248 + $0x18] sm:$0xff]
        %1254 = vset.pattern.permute.xlu0 0
        %1255 = vperm.xlu0 %1254, %v1249
        %v1256 = vpop.permute.xlu0 %1255
        %1259 = vset.pattern.permute.xlu0 0
        %1260 = vperm.xlu0 %1259, %v1250
        %v1261 = vpop.permute.xlu0 %1260
        %1264 = vset.pattern.permute.xlu0 0
        %1265 = vperm.xlu0 %1264, %v1251
        %v1266 = vpop.permute.xlu0 %1265
        %1269 = vset.pattern.permute.xlu0 0
        %1270 = vperm.xlu0 %1269, %v1252
        %v1271 = vpop.permute.xlu0 %1270
        %1282 = vrot.lane.b32.xlu0 %v1153, 60
        %v1283 = vpop.permute.xlu0 %1282
        %1284 = vrot.lane.b32.xlu0 %v1154, 60
        %v1285 = vpop.permute.xlu0 %1284
        %1286 = vrot.lane.b32.xlu0 %v1155, 60
        %v1287 = vpop.permute.xlu0 %1286
        %1288 = vrot.lane.b32.xlu0 %v1199, 60
        %v1289 = vpop.permute.xlu0 %1288
        %1290 = vrot.lane.b32.xlu0 %v1200, 60
        %v1291 = vpop.permute.xlu0 %1290
        %1292 = vrot.lane.b32.xlu0 %v1198, 60
        %v1293 = vpop.permute.xlu0 %1292
        %1294 = vrot.lane.b32.xlu0 %v1211, 60
        %v1295 = vpop.permute.xlu0 %1294
        %1296 = vrot.lane.b32.xlu0 %v1212, 60
        %v1297 = vpop.permute.xlu0 %1296
        %1298 = vrot.lane.b32.xlu0 %v1209, 60
        %v1299 = vpop.permute.xlu0 %1298
        %1300 = vrot.lane.b32.xlu0 %v1177, 60
        %v1301 = vpop.permute.xlu0 %1300
        %1302 = vrot.lane.b32.xlu0 %v1178, 60
        %v1303 = vpop.permute.xlu0 %1302
        %1304 = vrot.lane.b32.xlu0 %v1179, 60
        %v1305 = vpop.permute.xlu0 %1304
        %1306 = vrot.lane.b32.xlu0 %v1216, 60
        %v1307 = vpop.permute.xlu0 %1306
        %1308 = vrot.lane.b32.xlu0 %v1215, 60
        %v1309 = vpop.permute.xlu0 %1308
        %1310 = vrot.lane.b32.xlu0 %v1226, 60
        %v1311 = vpop.permute.xlu0 %1310
        %1312 = vrot.lane.b32.xlu0 %v1227, 60
        %v1313 = vpop.permute.xlu0 %1312
        %1314 = vrot.lane.b32.xlu0 %v1225, 60
        %v1315 = vpop.permute.xlu0 %1314
        %1316 = vrot.lane.b32.xlu0 %v1184, 60
        %v1317 = vpop.permute.xlu0 %1316
        %1318 = vrot.lane.b32.xlu0 %v1185, 60
        %v1319 = vpop.permute.xlu0 %1318
        %1320 = vrot.lane.b32.xlu0 %v1186, 60
        %v1321 = vpop.permute.xlu0 %1320
        %1322 = vrot.lane.b32.xlu0 %v1231, 60
        %v1323 = vpop.permute.xlu0 %1322
        %1324 = vrot.lane.b32.xlu0 %v1230, 60
        %v1325 = vpop.permute.xlu0 %1324
        %1326 = vrot.lane.b32.xlu0 %v1241, 60
        %v1327 = vpop.permute.xlu0 %1326
        %1328 = vrot.lane.b32.xlu0 %v1242, 60
        %v1329 = vpop.permute.xlu0 %1328
        %1330 = vrot.lane.b32.xlu0 %v1240, 60
        %v1331 = vpop.permute.xlu0 %1330
        %v1332 = vsel %vm467, %v1283, %v1285
        %v1333 = vsel %vm467, %v1285, %v1287
        %v1334 = vsel %vm467, %v1289, %v1291
        %v1335 = vsel %vm467, %v1291, %v1293
        %v1336 = vsel %vm467, %v1295, %v1297
        %v1337 = vsel %vm467, %v1297, %v1299
        %v1338 = vsel %vm467, %v1301, %v1303
        %v1339 = vsel %vm467, %v1303, %v1305
        %v1340 = vsel %vm467, %v1291, %v1307
        %v1341 = vsel %vm467, %v1307, %v1309
        %v1342 = vsel %vm467, %v1311, %v1313
        %v1343 = vsel %vm467, %v1313, %v1315
        %v1344 = vsel %vm467, %v1317, %v1319
        %v1345 = vsel %vm467, %v1319, %v1321
        %v1346 = vsel %vm467, %v1307, %v1323
        %v1347 = vsel %vm467, %v1323, %v1325
        %v1348 = vsel %vm467, %v1327, %v1329
        %v1349 = vsel %vm467, %v1329, %v1331
        %v1369 = vsel %vm592, %v1244, 0
        %v1372 = vsel %vm592, %v1245, 0
        %v1375 = vsel %vm592, %v1246, 0
        %v1378 = vsel %vm592, %v1247, 0
        %1380 = vmatpush.msra.mxu0 0.0
        %1381 = vmatpush.msra.mxu0 0.0
        %1382 = vmatpush.msra.mxu0 0.0
        %1383 = vmatpush.msra.mxu0 0.0
        %1384 = vmatpush.msra.mxu0 0.0
        %1385 = vmatpush.msra.mxu0 0.0
        %1386 = vmatpush.msra.mxu0 0.0
        %1387 = vmatpush.msra.mxu0 %v1348
        %1388 = vmatpush.msra.mxu0 %v1346
        %1389 = vmatpush.msra.mxu0 %v1344
        %1390 = vmatpush.msra.mxu0 %v1342
        %1391 = vmatpush.msra.mxu0 %v1340
        %1392 = vmatpush.msra.mxu0 %v1338
        %1393 = vmatpush.msra.mxu0 %v1336
        %1394 = vmatpush.msra.mxu0 %v1334
        %1395 = vmatpush.msra.mxu0 %v1332
        %1396 = vmatmul.f32.gmra.mxu0 %v1369
        %v1397 = vpop.f32.mrf.mxu0
        %v1398 = vadd.f32 %v1256, %v1397
        %1399 = vmatmul.f32.gmra.mxu0 %v1372
        %v1400 = vpop.f32.mrf.mxu0
        %v1401 = vadd.f32 %v1261, %v1400
        %1402 = vmatmul.f32.gmra.mxu0 %v1375
        %v1403 = vpop.f32.mrf.mxu0
        %v1404 = vadd.f32 %v1266, %v1403
        %1405 = vmatmul.f32.gmra.mxu0 %v1378
        %v1406 = vpop.f32.mrf.mxu0
        %v1407 = vadd.f32 %v1271, %v1406
        %1408 = vdwg.mxu0
        %1409 = vmatpush.msra.mxu0 0.0
        %1410 = vmatpush.msra.mxu0 0.0
        %1411 = vmatpush.msra.mxu0 0.0
        %1412 = vmatpush.msra.mxu0 0.0
        %1413 = vmatpush.msra.mxu0 0.0
        %1414 = vmatpush.msra.mxu0 0.0
        %1415 = vmatpush.msra.mxu0 0.0
        %1416 = vmatpush.msra.mxu0 %v1349
        %1417 = vmatpush.msra.mxu0 %v1347
        %1418 = vmatpush.msra.mxu0 %v1345
        %1419 = vmatpush.msra.mxu0 %v1343
        %1420 = vmatpush.msra.mxu0 %v1341
        %1421 = vmatpush.msra.mxu0 %v1339
        %1422 = vmatpush.msra.mxu0 %v1337
        %1423 = vmatpush.msra.mxu0 %v1335
        %1424 = vmatpush.msra.mxu0 %v1333
        %1425 = vmatmul.f32.gmra.mxu0 %v1369
        %v1426 = vpop.f32.mrf.mxu0
        %v1427 = vadd.f32 %v1256, %v1426
        %1428 = vmatmul.f32.gmra.mxu0 %v1372
        %v1429 = vpop.f32.mrf.mxu0
        %v1430 = vadd.f32 %v1261, %v1429
        %1431 = vmatmul.f32.gmra.mxu0 %v1375
        %v1432 = vpop.f32.mrf.mxu0
        %v1433 = vadd.f32 %v1266, %v1432
        %1434 = vmatmul.f32.gmra.mxu0 %v1378
        %v1435 = vpop.f32.mrf.mxu0
        %v1436 = vadd.f32 %v1271, %v1435
        %1437 = vdwg.mxu0
        %v1438 = vmax.f32 %v1398, 0.0
        %v1439 = vmax.f32 %v1427, 0.0
        %v1440 = vmax.f32 %v1401, 0.0
        %v1441 = vmax.f32 %v1430, 0.0
        %v1442 = vmax.f32 %v1404, 0.0
        %v1443 = vmax.f32 %v1433, 0.0
        %v1444 = vmax.f32 %v1407, 0.0
        %v1445 = vmax.f32 %v1436, 0.0
        %s1446 = scalar_lea.vmem %s2, 16
        %v1447 = vld [vmem:[%s1446] sm:$0xff]
        %s1448 = scalar_lea.vmem %s4, 16
        %v1449 = vld [vmem:[%s1448] sm:$0xff]
        %1451 = vset.pattern.permute.xlu0 0
        %1452 = vperm.xlu0 %1451, %v1449
        %v1453 = vpop.permute.xlu0 %1452
        %v1456 = vsel %vm678, %v1447, 0
        %1458 = vmatpush.msra.mxu0 0.0
        %1459 = vmatpush.msra.mxu0 0.0
        %1460 = vmatpush.msra.mxu0 0.0
        %1461 = vmatpush.msra.mxu0 0.0
        %1462 = vmatpush.msra.mxu0 0.0
        %1463 = vmatpush.msra.mxu0 0.0
        %1464 = vmatpush.msra.mxu0 0.0
        %1465 = vmatpush.msra.mxu0 0.0
        %1466 = vmatpush.msra.mxu0 0.0
        %1467 = vmatpush.msra.mxu0 0.0
        %1468 = vmatpush.msra.mxu0 0.0
        %1469 = vmatpush.msra.mxu0 0.0
        %1470 = vmatpush.msra.mxu0 %v1444
        %1471 = vmatpush.msra.mxu0 %v1442
        %1472 = vmatpush.msra.mxu0 %v1440
        %1473 = vmatpush.msra.mxu0 %v1438
        %1474 = vmatmul.f32.gmra.mxu0 %v1456
        %v1475 = vpop.f32.mrf.mxu0
        %v1476 = vadd.f32 %v1453, %v1475
        %1477 = vdwg.mxu0
        %1478 = vmatpush.msra.mxu0 0.0
        %1479 = vmatpush.msra.mxu0 0.0
        %1480 = vmatpush.msra.mxu0 0.0
        %1481 = vmatpush.msra.mxu0 0.0
        %1482 = vmatpush.msra.mxu0 0.0
        %1483 = vmatpush.msra.mxu0 0.0
        %1484 = vmatpush.msra.mxu0 0.0
        %1485 = vmatpush.msra.mxu0 0.0
        %1486 = vmatpush.msra.mxu0 0.0
        %1487 = vmatpush.msra.mxu0 0.0
        %1488 = vmatpush.msra.mxu0 0.0
        %1489 = vmatpush.msra.mxu0 0.0
        %1490 = vmatpush.msra.mxu0 %v1445
        %1491 = vmatpush.msra.mxu0 %v1443
        %1492 = vmatpush.msra.mxu0 %v1441
        %1493 = vmatpush.msra.mxu0 %v1439
        %1494 = vmatmul.f32.gmra.mxu0 %v1456
        %v1495 = vpop.f32.mrf.mxu0
        %v1496 = vadd.f32 %v1453, %v1495
        %1497 = vdwg.mxu0
        %v1498 = vmax.f32 %v1476, 0.0
        %v1499 = vmax.f32 %v1496, 0.0
        %s1500 = scalar_lea.vmem %s286, 32 [#allocation7]
        %1501 = vst [vmem:[%s1500] sm:$0xff] %v1498
        %1502 = vst [vmem:[%s1500 + $0x8] sm:$0xff] %v1499
        %s1503 = scalar_lea.vmem [#allocation5], 12
        %v1504 = vld [vmem:[%s1503] sm:$0xf]
        %v1505 = vld [vmem:[%s252] sm:$0xff]
        %v1506 = vld [vmem:[%s252 + $0x8] sm:$0xff]
        %v1508 = vperm.slane %v1504, 0
        %v1509 = vperm.slane %v1504, 2
        %v1512 = vperm.slane %v1508, 0
        %v1513 = vperm.slane %v1509, 0
        %v1514 = vmul.f32 %v1505, %v1512
        %v1515 = vmul.f32 %v1506, %v1513
        %v1516 = vld [vmem:[%s252 + $0x10] sm:$0xff]
        %v1517 = vperm.slane %v1504, 1
        %v1518 = vperm.slane %v1504, 3
        %v1521 = vperm.slane %v1517, 1
        %v1522 = vperm.slane %v1518, 1
        %1525 = vrot.lane.b32.xlu0 %v1521, 24
        %v1526 = vpop.permute.xlu0 %1525
        %1527 = vrot.lane.b32.xlu0 %v1522, 24
        %v1528 = vpop.permute.xlu0 %1527
        %vm1529 = vcmask 195584
        %v1530 = vsel %vm1529, %v1526, %v1528
        %v1534 = vmul.f32 %v1505, %v1526
        %v1535 = vmul.f32 %v1506, %v1530
        %v1536 = vmul.f32 %v1516, %v1528
        %v1537 = vld [vmem:[%s252 + $0x18] sm:$0xff]
        %1540 = vrot.lane.b32.xlu0 %v1512, 64
        %v1541 = vpop.permute.xlu0 %1540
        %1542 = vrot.lane.b32.xlu0 %v1513, 64
        %v1543 = vpop.permute.xlu0 %1542
        %v1544 = vsel %vm446, %v1541, %v1543
        %v1548 = vmul.f32 %v1506, %v1541
        %v1549 = vmul.f32 %v1516, %v1544
        %v1550 = vmul.f32 %v1537, %v1543
        %1551 = vrot.lane.b32.xlu0 %v1521, 88
        %v1552 = vpop.permute.xlu0 %1551
        %1553 = vrot.lane.b32.xlu0 %v1522, 88
        %v1554 = vpop.permute.xlu0 %1553
        %vm1555 = vcmask 719872
        %v1556 = vsel %vm1555, %v1552, %v1554
        %v1560 = vmul.f32 %v1506, %v1552
        %v1561 = vmul.f32 %v1516, %v1556
        %v1562 = vmul.f32 %v1537, %v1554
        %v1563 = vld [vmem:[%s252 + $0x20] sm:$0xff]
        %v1564 = vmul.f32 %v1537, %v1512
        %v1565 = vmul.f32 %v1563, %v1513
        %v1566 = vld [vmem:[%s252 + $0x28] sm:$0xff]
        %v1567 = vmul.f32 %v1537, %v1526
        %v1568 = vmul.f32 %v1563, %v1530
        %v1569 = vmul.f32 %v1566, %v1528
        %1573 = vrot.lane.b32.xlu0 %v1505, 116
        %v1574 = vpop.permute.xlu0 %1573
        %1575 = vrot.lane.b32.xlu0 %v1506, 116
        %v1576 = vpop.permute.xlu0 %1575
        %1577 = vrot.lane.b32.xlu0 %v1516, 116
        %v1578 = vpop.permute.xlu0 %1577
        %vm1579 = vcmask 949248
        %v1580 = vsel %vm1579, %v1574, %v1576
        %v1581 = vsel %vm1579, %v1576, %v1578
        %1587 = vrot.lane.b32.xlu0 %v1534, 104
        %v1588 = vpop.permute.xlu0 %1587
        %1589 = vrot.lane.b32.xlu0 %v1535, 104
        %v1590 = vpop.permute.xlu0 %1589
        %1591 = vrot.lane.b32.xlu0 %v1536, 104
        %v1592 = vpop.permute.xlu0 %1591
        %vm1593 = vcmask 850944
        %v1594 = vsel %vm1593, %v1588, %v1590
        %v1595 = vsel %vm1593, %v1590, %v1592
        %1601 = vrot.lane.b32.xlu0 %v1548, 64
        %v1602 = vpop.permute.xlu0 %1601
        %1603 = vrot.lane.b32.xlu0 %v1549, 64
        %v1604 = vpop.permute.xlu0 %1603
        %1605 = vrot.lane.b32.xlu0 %v1550, 64
        %v1606 = vpop.permute.xlu0 %1605
        %v1607 = vsel %vm446, %v1602, %v1604
        %v1608 = vsel %vm446, %v1604, %v1606
        %1612 = vrot.lane.b32.xlu0 %v1506, 52
        %v1613 = vpop.permute.xlu0 %1612
        %1614 = vrot.lane.b32.xlu0 %v1516, 52
        %v1615 = vpop.permute.xlu0 %1614
        %1616 = vrot.lane.b32.xlu0 %v1537, 52
        %v1617 = vpop.permute.xlu0 %1616
        %vm1618 = vcmask 424960
        %v1619 = vsel %vm1618, %v1613, %v1615
        %v1620 = vsel %vm1618, %v1615, %v1617
        %1626 = vrot.lane.b32.xlu0 %v1560, 40
        %v1627 = vpop.permute.xlu0 %1626
        %1628 = vrot.lane.b32.xlu0 %v1561, 40
        %v1629 = vpop.permute.xlu0 %1628
        %1630 = vrot.lane.b32.xlu0 %v1562, 40
        %v1631 = vpop.permute.xlu0 %1630
        %vm1632 = vcmask 326656
        %v1633 = vsel %vm1632, %v1627, %v1629
        %v1634 = vsel %vm1632, %v1629, %v1631
        %1639 = vrot.lane.b32.xlu0 %v1537, 116
        %v1640 = vpop.permute.xlu0 %1639
        %1641 = vrot.lane.b32.xlu0 %v1563, 116
        %v1642 = vpop.permute.xlu0 %1641
        %1643 = vrot.lane.b32.xlu0 %v1566, 116
        %v1644 = vpop.permute.xlu0 %1643
        %v1645 = vsel %vm1579, %v1640, %v1642
        %v1646 = vsel %vm1579, %v1642, %v1644
        %1652 = vrot.lane.b32.xlu0 %v1567, 104
        %v1653 = vpop.permute.xlu0 %1652
        %1654 = vrot.lane.b32.xlu0 %v1568, 104
        %v1655 = vpop.permute.xlu0 %1654
        %1656 = vrot.lane.b32.xlu0 %v1569, 104
        %v1657 = vpop.permute.xlu0 %1656
        %v1658 = vsel %vm1593, %v1653, %v1655
        %v1659 = vsel %vm1593, %v1655, %v1657
        %s1662 = scalar_lea.vmem %s1, 96
        %v1663 = vld [vmem:[%s1662] sm:$0xff]
        %v1664 = vld [vmem:[%s1662 + $0x8] sm:$0xff]
        %v1665 = vld [vmem:[%s1662 + $0x10] sm:$0xff]
        %v1666 = vld [vmem:[%s1662 + $0x18] sm:$0xff]
        %s1667 = scalar_lea.vmem %s3, 96
        %v1668 = vld [vmem:[%s1667] sm:$0xff]
        %v1669 = vld [vmem:[%s1667 + $0x8] sm:$0xff]
        %v1670 = vld [vmem:[%s1667 + $0x10] sm:$0xff]
        %v1671 = vld [vmem:[%s1667 + $0x18] sm:$0xff]
        %1673 = vset.pattern.permute.xlu0 0
        %1674 = vperm.xlu0 %1673, %v1668
        %v1675 = vpop.permute.xlu0 %1674
        %1678 = vset.pattern.permute.xlu0 0
        %1679 = vperm.xlu0 %1678, %v1669
        %v1680 = vpop.permute.xlu0 %1679
        %1683 = vset.pattern.permute.xlu0 0
        %1684 = vperm.xlu0 %1683, %v1670
        %v1685 = vpop.permute.xlu0 %1684
        %1688 = vset.pattern.permute.xlu0 0
        %1689 = vperm.xlu0 %1688, %v1671
        %v1690 = vpop.permute.xlu0 %1689
        %v1693 = vsel %vm592, %v1663, 0
        %v1696 = vsel %vm592, %v1664, 0
        %v1699 = vsel %vm592, %v1665, 0
        %v1702 = vsel %vm592, %v1666, 0
        %1704 = vmatpush.msra.mxu0 0.0
        %1705 = vmatpush.msra.mxu0 0.0
        %1706 = vmatpush.msra.mxu0 0.0
        %1707 = vmatpush.msra.mxu0 0.0
        %1708 = vmatpush.msra.mxu0 0.0
        %1709 = vmatpush.msra.mxu0 0.0
        %1710 = vmatpush.msra.mxu0 0.0
        %1711 = vmatpush.msra.mxu0 %v1658
        %1712 = vmatpush.msra.mxu0 %v1645
        %1713 = vmatpush.msra.mxu0 %v1564
        %1714 = vmatpush.msra.mxu0 %v1633
        %1715 = vmatpush.msra.mxu0 %v1619
        %1716 = vmatpush.msra.mxu0 %v1607
        %1717 = vmatpush.msra.mxu0 %v1594
        %1718 = vmatpush.msra.mxu0 %v1580
        %1719 = vmatpush.msra.mxu0 %v1514
        %1720 = vmatmul.f32.gmra.mxu0 %v1693
        %v1721 = vpop.f32.mrf.mxu0
        %v1722 = vadd.f32 %v1675, %v1721
        %1723 = vmatmul.f32.gmra.mxu0 %v1696
        %v1724 = vpop.f32.mrf.mxu0
        %v1725 = vadd.f32 %v1680, %v1724
        %1726 = vmatmul.f32.gmra.mxu0 %v1699
        %v1727 = vpop.f32.mrf.mxu0
        %v1728 = vadd.f32 %v1685, %v1727
        %1729 = vmatmul.f32.gmra.mxu0 %v1702
        %v1730 = vpop.f32.mrf.mxu0
        %v1731 = vadd.f32 %v1690, %v1730
        %1732 = vdwg.mxu0
        %1733 = vmatpush.msra.mxu0 0.0
        %1734 = vmatpush.msra.mxu0 0.0
        %1735 = vmatpush.msra.mxu0 0.0
        %1736 = vmatpush.msra.mxu0 0.0
        %1737 = vmatpush.msra.mxu0 0.0
        %1738 = vmatpush.msra.mxu0 0.0
        %1739 = vmatpush.msra.mxu0 0.0
        %1740 = vmatpush.msra.mxu0 %v1659
        %1741 = vmatpush.msra.mxu0 %v1646
        %1742 = vmatpush.msra.mxu0 %v1565
        %1743 = vmatpush.msra.mxu0 %v1634
        %1744 = vmatpush.msra.mxu0 %v1620
        %1745 = vmatpush.msra.mxu0 %v1608
        %1746 = vmatpush.msra.mxu0 %v1595
        %1747 = vmatpush.msra.mxu0 %v1581
        %1748 = vmatpush.msra.mxu0 %v1515
        %1749 = vmatmul.f32.gmra.mxu0 %v1693
        %v1750 = vpop.f32.mrf.mxu0
        %v1751 = vadd.f32 %v1675, %v1750
        %1752 = vmatmul.f32.gmra.mxu0 %v1696
        %v1753 = vpop.f32.mrf.mxu0
        %v1754 = vadd.f32 %v1680, %v1753
        %1755 = vmatmul.f32.gmra.mxu0 %v1699
        %v1756 = vpop.f32.mrf.mxu0
        %v1757 = vadd.f32 %v1685, %v1756
        %1758 = vmatmul.f32.gmra.mxu0 %v1702
        %v1759 = vpop.f32.mrf.mxu0
        %v1760 = vadd.f32 %v1690, %v1759
        %1761 = vdwg.mxu0
        %v1762 = vmax.f32 %v1722, 0.0
        %v1763 = vmax.f32 %v1751, 0.0
        %v1764 = vmax.f32 %v1725, 0.0
        %v1765 = vmax.f32 %v1754, 0.0
        %v1766 = vmax.f32 %v1728, 0.0
        %v1767 = vmax.f32 %v1757, 0.0
        %v1768 = vmax.f32 %v1731, 0.0
        %v1769 = vmax.f32 %v1760, 0.0
        %s1770 = scalar_lea.vmem %s2, 24
        %v1771 = vld [vmem:[%s1770] sm:$0xff]
        %s1772 = scalar_lea.vmem %s4, 24
        %v1773 = vld [vmem:[%s1772] sm:$0xff]
        %1775 = vset.pattern.permute.xlu0 0
        %1776 = vperm.xlu0 %1775, %v1773
        %v1777 = vpop.permute.xlu0 %1776
        %v1780 = vsel %vm678, %v1771, 0
        %1782 = vmatpush.msra.mxu0 0.0
        %1783 = vmatpush.msra.mxu0 0.0
        %1784 = vmatpush.msra.mxu0 0.0
        %1785 = vmatpush.msra.mxu0 0.0
        %1786 = vmatpush.msra.mxu0 0.0
        %1787 = vmatpush.msra.mxu0 0.0
        %1788 = vmatpush.msra.mxu0 0.0
        %1789 = vmatpush.msra.mxu0 0.0
        %1790 = vmatpush.msra.mxu0 0.0
        %1791 = vmatpush.msra.mxu0 0.0
        %1792 = vmatpush.msra.mxu0 0.0
        %1793 = vmatpush.msra.mxu0 0.0
        %1794 = vmatpush.msra.mxu0 %v1768
        %1795 = vmatpush.msra.mxu0 %v1766
        %1796 = vmatpush.msra.mxu0 %v1764
        %1797 = vmatpush.msra.mxu0 %v1762
        %1798 = vmatmul.f32.gmra.mxu0 %v1780
        %v1799 = vpop.f32.mrf.mxu0
        %v1800 = vadd.f32 %v1777, %v1799
        %1801 = vdwg.mxu0
        %1802 = vmatpush.msra.mxu0 0.0
        %1803 = vmatpush.msra.mxu0 0.0
        %1804 = vmatpush.msra.mxu0 0.0
        %1805 = vmatpush.msra.mxu0 0.0
        %1806 = vmatpush.msra.mxu0 0.0
        %1807 = vmatpush.msra.mxu0 0.0
        %1808 = vmatpush.msra.mxu0 0.0
        %1809 = vmatpush.msra.mxu0 0.0
        %1810 = vmatpush.msra.mxu0 0.0
        %1811 = vmatpush.msra.mxu0 0.0
        %1812 = vmatpush.msra.mxu0 0.0
        %1813 = vmatpush.msra.mxu0 0.0
        %1814 = vmatpush.msra.mxu0 %v1769
        %1815 = vmatpush.msra.mxu0 %v1767
        %1816 = vmatpush.msra.mxu0 %v1765
        %1817 = vmatpush.msra.mxu0 %v1763
        %1818 = vmatmul.f32.gmra.mxu0 %v1780
        %v1819 = vpop.f32.mrf.mxu0
        %v1820 = vadd.f32 %v1777, %v1819
        %1821 = vdwg.mxu0
        %v1822 = vmax.f32 %v1800, 0.0
        %v1823 = vmax.f32 %v1820, 0.0
        %s1824 = scalar_lea.vmem %s286, 48 [#allocation7]
        %1825 = vst [vmem:[%s1824] sm:$0xff] %v1822
        %1826 = vst [vmem:[%s1824 + $0x8] sm:$0xff] %v1823
        %s1827 = sand.u32 %s163, 1
        %s1828 = scalar_lea.sflag [#allocation4], %s1827
        %s1829 = sand.u32 %s163, 1
        %s1830 = smul.addr %s1829, 64
        %s1831 = scalar_lea.vmem [#allocation7], %s1830
        // Predicated region
        $region53: #{tpu_custom_call.1} parent=43 // pred_check
          %p1832 = pneg %p173
        $region54: #{tpu_custom_call.1} parent=43 // pred_check_branch
          %1834 = sbr.rel (%p1832) target = $region56
        $region55: #{tpu_custom_call.1} parent=43 // pred_region
          %1836 = vsyncadd %s1828, 0
          %s1837 = smul.addr %s24, 8
          %s1838 = smul.addr %s1837, 8
          %s1839 = scalar_lea.hbm %s6, %s1838
          %s1840 = sshll.u32 %s1831, 4
          %s1841 = int_to_ptr.vmem [resolvable:$true] %s1840
          %s1842 = sshll.u32 %s1839, 4
          %s1843 = int_to_ptr.hbm [resolvable:$true] %s1842
          %1848 = dma.vmem_to_hbm [thread:$0]  %s1841, 1024, %s1843, %s1828, 256, 256, 16
        $region56: #{tpu_custom_call.1} parent=43 // pred_fallthru
          _
      $region44: #{tpu_custom_call.1} parent=5 // pred_fallthru
        _
      %p1849 = scmp.le.s32.totalorder 2, %s19
      // Predicated region
      $region57: #{tpu_custom_call.1} parent=5 // pred_check
        %p1850 = pneg %p1849
      $region58: #{tpu_custom_call.1} parent=5 // pred_check_branch
        %1852 = sbr.rel (%p1850) target = $region60
      $region59: #{tpu_custom_call.1} parent=5 // pred_region
        %s1853 = ssub.s32 %s19, 2
        // Predicated region
        $region61: #{tpu_custom_call.1} parent=59 // pred_check
          %p1854 = pneg %p179
        $region62: #{tpu_custom_call.1} parent=59 // pred_check_branch
          %1856 = sbr.rel (%p1854) target = $region64
        $region63: #{tpu_custom_call.1} parent=59 // pred_region
          %s1857 = sand.u32 %s164, 1
          %s1858 = scalar_lea.sflag [#allocation4], %s1857
          %s1859 = sand.u32 %s164, 1
          %s1860 = smul.addr %s1859, 64
          %s1861 = scalar_lea.vmem [#allocation7], %s1860
          %1863 = dma.done %s1858, 1024
        $region64: #{tpu_custom_call.1} parent=59 // pred_fallthru
          _
      $region60: #{tpu_custom_call.1} parent=5 // pred_fallthru
        _
    $region6: #{tpu_custom_call.1} parent=1 // loop_footer
      %s23 = sadd.s32 1, %s19
    $region7: #{tpu_custom_call.1} parent=1 // loop_footer_branch
      %18 = sbr.rel target = $region3
    $region8: #{tpu_custom_call.1} parent=1 // loop_exit
      _
    %1864 = vsyncpa [#allocation3], 1
    %s1865 = scalar_lea.sflag [#allocation3], 1
    %1866 = vsyncpa %s1865, 1
    %1867 = vsyncpa [#allocation6], 1
    %1868 = vsyncpa [#allocation4], 1
    %s1869 = scalar_lea.sflag [#allocation4], 1
    %1870 = vsyncpa %s1869, 1

</llo_original>
